<compile_context>
chip_gen: v6e
topology: v6e:2x2x1
jax: 0.10.0
libtpu: 0.0.40
codegen_flags: <defaults>
</compile_context>

<pallas_src>
import functools
import math

import jax
import jax.numpy as jnp
from jax.experimental import pallas as pl
from jax.experimental.pallas import tpu as pltpu

_LN_EPS = 1e-5
_VMEM_LIMIT = 48 * 1024 * 1024

_COMPILER_PARAMS = pltpu.CompilerParams(
    dimension_semantics=("parallel",),
    vmem_limit_bytes=_VMEM_LIMIT,
)


# ----------------------------------------------------------------------------
# Small helpers
# ----------------------------------------------------------------------------
def _round_up(n, m):
    return ((n + m - 1) // m) * m


def _cdiv(a, b):
    return -(-a // b)


def _pick_batch_tile(batch, max_tile):
    """Choose a batch tile and padded batch.

    Ensures at least 2 grid steps whenever batch >= 2 so the 'parallel' axis can be
    sharded across both TensorCores on v7x, while capping the tile at max_tile.
    """
    if batch <= 1:
        return 1, batch
    nb = max(2, _cdiv(batch, max_tile))
    tb = _cdiv(batch, nb)
    nb = max(2, _cdiv(batch, tb))
    return tb, tb * nb


def _layernorm_f32(x, g, b):
    """LayerNorm over the last axis in f32 (matches torch.nn.LayerNorm, eps=1e-5)."""
    mu = jnp.mean(x, axis=-1, keepdims=True)
    var = jnp.mean(jnp.square(x - mu), axis=-1, keepdims=True)
    return (x - mu) * jax.lax.rsqrt(var + _LN_EPS) * g + b


# ----------------------------------------------------------------------------
# Kernel 1: fused attention layer
#   LayerNorm1 + Q/K/V projections + per-head attention + out-proj + residual.
#   Grid over batch tiles; one lane-dense (tb, S, D) store per step.
# ----------------------------------------------------------------------------
def attn_layer_kernel(x_ref, g_ref, b_ref,
                      wq_ref, bq_ref, wk_ref, bk_ref, wv_ref, bv_ref,
                      wo_ref, bo_ref, o_ref, *, num_heads, head_dim, scale):
    tb, seq, d = x_ref.shape
    x = x_ref[...]                                        # (tb, S, D), native dtype
    xf = x.reshape(tb * seq, d).astype(jnp.float32)       # f32 copy used for LN + residual
    xn = _layernorm_f32(xf, g_ref[...].astype(jnp.float32),
                        b_ref[...].astype(jnp.float32))

    # Projections: MXU operands stay in the parameter dtype, f32 accumulation.
    wdt = wq_ref.dtype
    xn_p = xn.astype(wdt)
    q = (jnp.dot(xn_p, wq_ref[...], preferred_element_type=jnp.float32)
         + bq_ref[...].astype(jnp.float32))
    k = (jnp.dot(xn_p, wk_ref[...], preferred_element_type=jnp.float32)
         + bk_ref[...].astype(jnp.float32))
    v = (jnp.dot(xn_p, wv_ref[...], preferred_element_type=jnp.float32)
         + bv_ref[...].astype(jnp.float32))

    # Attention matmul operands in the native activation dtype (no f32 up-cast for bf16).
    mdt = x.dtype
    q = q.astype(mdt).reshape(tb, seq, d)
    k = k.astype(mdt).reshape(tb, seq, d)
    v = v.astype(mdt).reshape(tb, seq, d)

    ctx_heads = []
    # TODO(synk): for large num_heads move heads onto a grid axis / head-major layout.
    for h in range(num_heads):
        lo = h * head_dim
        hi = lo + head_dim
        qh = q[:, :, lo:hi]
        kh = k[:, :, lo:hi]
        vh = v[:, :, lo:hi]
        s = jnp.einsum('bqe,bke->bqk', qh, kh,
                       preferred_element_type=jnp.float32) * scale
        s = s - jnp.max(s, axis=-1, keepdims=True)
        p = jnp.exp(s)
        l = jnp.sum(p, axis=-1, keepdims=True)
        r = pl.reciprocal(l, approx=True)                 # EUP slot
        r = r * (2.0 - l * r)                             # one Newton step (tiny, restores f32 acc)
        p = p * r
        ctx_heads.append(jnp.einsum('bqk,bke->bqe', p.astype(mdt), vh,
                                    preferred_element_type=jnp.float32))
    ctx = jnp.concatenate(ctx_heads, axis=-1).reshape(tb * seq, d)   # (tb*S, D), f32

    y = (jnp.dot(ctx.astype(wdt), wo_ref[...], preferred_element_type=jnp.float32)
         + bo_ref[...].astype(jnp.float32))
    # Dropout is identity in eval mode.  Single full-width store of the layer output.
    o_ref[...] = (xf + y).reshape(tb, seq, d).astype(o_ref.dtype)


def _attention_layer(x3, ln_g, ln_b, lp, *, num_heads, batch_tile):
    bsz, seq, d = x3.shape
    head_dim = d // num_heads
    # Split the fused QKV weight outside the kernel so each projection output is exactly
    # D lanes (no in-kernel slicing of a (., 3D) activation).
    wq, wk, wv = lp["wqkv"][:, :d], lp["wqkv"][:, d:2 * d], lp["wqkv"][:, 2 * d:]
    bq, bk, bv = lp["bqkv"][:, :d], lp["bqkv"][:, d:2 * d], lp["bqkv"][:, 2 * d:]

    tb, b_pad = _pick_batch_tile(bsz, batch_tile)
    xp = x3 if b_pad == bsz else jnp.pad(x3, ((0, b_pad - bsz), (0, 0), (0, 0)))

    def wspec(shape):
        return pl.BlockSpec(shape, lambda i: (0,) * len(shape))

    kernel = functools.partial(attn_layer_kernel, num_heads=num_heads,
                               head_dim=head_dim, scale=head_dim ** -0.5)
    out = pl.pallas_call(
        kernel,
        out_shape=jax.ShapeDtypeStruct((b_pad, seq, d), x3.dtype),
        grid=(b_pad // tb,),
        in_specs=[
            pl.BlockSpec((tb, seq, d), lambda i: (i, 0, 0)),
            wspec((1, d)), wspec((1, d)),                  # ln gamma/beta
            wspec((d, d)), wspec((1, d)),                  # wq, bq
            wspec((d, d)), wspec((1, d)),                  # wk, bk
            wspec((d, d)), wspec((1, d)),                  # wv, bv
            wspec((d, d)), wspec((1, d)),                  # wo, bo
        ],
        out_specs=pl.BlockSpec((tb, seq, d), lambda i: (i, 0, 0)),
        compiler_params=_COMPILER_PARAMS,
    )(xp, ln_g, ln_b, wq, bq, wk, bk, wv, bv, lp["wo"], lp["bo"])
    return out[:bsz]


# ----------------------------------------------------------------------------
# Kernel 2: LayerNorm2 + FFN + residual + mean over sequence + final fc_out
# ----------------------------------------------------------------------------
def ffn_pool_out_kernel(x_ref, g_ref, b_ref, w1_ref, b1_ref, w2_ref, b2_ref,
                        wo_ref, bo_ref, o_ref):
    tb, seq, d = x_ref.shape
    x = x_ref[...]                                        # (tb, S, D)
    xf = x.reshape(tb * seq, d).astype(jnp.float32)
    xn = _layernorm_f32(xf, g_ref[...].astype(jnp.float32),
                        b_ref[...].astype(jnp.float32))

    wdt = w1_ref.dtype
    h = (jnp.dot(xn.astype(wdt), w1_ref[...], preferred_element_type=jnp.float32)
         + b1_ref[...].astype(jnp.float32))
    # Exact GELU (erf form), matching torch.nn.GELU(approximate='none').
    h = 0.5 * h * (1.0 + jax.lax.erf(h * (1.0 / math.sqrt(2.0))))
    # TODO(synk): training-mode dropout (prng mask + 1/(1-p) scaling) not implemented;
    #             eval-mode dropout is the identity, which is what is computed here.
    y = (jnp.dot(h.astype(wdt), w2_ref[...], preferred_element_type=jnp.float32)
         + b2_ref[...].astype(jnp.float32))
    y = xf + y                                            # residual (pre-LN activations)

    # Mean over the sequence axis: cheap sublane (XLU) reduction, no MXU work.
    pooled = jnp.mean(y.reshape(tb, seq, d), axis=1)      # (tb, D)

    out = (jnp.dot(pooled.astype(wo_ref.dtype), wo_ref[...],
                   preferred_element_type=jnp.float32)
           + bo_ref[...].astype(jnp.float32))
    o_ref[...] = out.astype(o_ref.dtype)                  # lane-dense (odim padded to 128)


def _ffn_pool_out(x3, g, bln, w1, b1, w2, b2, wo, bo, *, batch_tile):
    bsz, seq, d = x3.shape
    hdim = w1.shape[1]
    odim = wo.shape[1]
    odim_pad = _round_up(odim, 128)                       # lane-dense final store
    if odim_pad != odim:
        wo = jnp.pad(wo, ((0, 0), (0, odim_pad - odim)))
        bo = jnp.pad(bo, ((0, 0), (0, odim_pad - odim)))

    tb, b_pad = _pick_batch_tile(bsz, batch_tile)
    xp = x3 if b_pad == bsz else jnp.pad(x3, ((0, b_pad - bsz), (0, 0), (0, 0)))

    out = pl.pallas_call(
        ffn_pool_out_kernel,
        out_shape=jax.ShapeDtypeStruct((b_pad, odim_pad), x3.dtype),
        grid=(b_pad // tb,),
        in_specs=[
            pl.BlockSpec((tb, seq, d), lambda i: (i, 0, 0)),
            pl.BlockSpec((1, d), lambda i: (0, 0)),
            pl.BlockSpec((1, d), lambda i: (0, 0)),
            pl.BlockSpec((d, hdim), lambda i: (0, 0)),
            pl.BlockSpec((1, hdim), lambda i: (0, 0)),
            pl.BlockSpec((hdim, d), lambda i: (0, 0)),
            pl.BlockSpec((1, d), lambda i: (0, 0)),
            pl.BlockSpec((d, odim_pad), lambda i: (0, 0)),
            pl.BlockSpec((1, odim_pad), lambda i: (0, 0)),
        ],
        out_specs=pl.BlockSpec((tb, odim_pad), lambda i: (i, 0)),
        compiler_params=_COMPILER_PARAMS,
    )(xp, g, bln, w1, b1, w2, b2, wo, bo)
    return out[:bsz, :odim]


# ----------------------------------------------------------------------------
# Full Transformer forward (eval mode) built from the two fused kernels
# ----------------------------------------------------------------------------
def transformer_forward(x, params, *, num_heads, batch_tile=8):
    if x.ndim == 2:
        x = x[:, None, :]                                 # (B, D) -> (B, 1, D)
    for lp in params["attn_layers"]:
        x = _attention_layer(x, params["ln1_g"], params["ln1_b"], lp,
                             num_heads=num_heads, batch_tile=batch_tile)
    return _ffn_pool_out(x, params["ln2_g"], params["ln2_b"],
                         params["w1"], params["b1"], params["w2"], params["b2"],
                         params["wout"], params["bout"], batch_tile=batch_tile)


# ----------------------------------------------------------------------------
# Parameter init (torch.nn.Linear-like uniform init; weights stored (in, out))
# ----------------------------------------------------------------------------
def init_transformer_params(key, input_dim, output_dim, num_heads, hidden_dim,
                            num_layers=1, dtype=jnp.float32):
    def linear(k, fan_in, w_shape, b_shape):
        kw, kb = jax.random.split(k)
        bound = 1.0 / math.sqrt(fan_in)
        return (jax.random.uniform(kw, w_shape, dtype, -bound, bound),
                jax.random.uniform(kb, b_shape, dtype, -bound, bound))

    keys = jax.random.split(key, 2 * num_layers + 3)
    attn_layers = []
    for l in range(num_layers):
        wqkv, bqkv = linear(keys[2 * l], input_dim,
                            (input_dim, 3 * input_dim), (1, 3 * input_dim))
        wo, bo = linear(keys[2 * l + 1], input_dim,
                        (input_dim, input_dim), (1, input_dim))
        attn_layers.append(dict(wqkv=wqkv, bqkv=bqkv, wo=wo, bo=bo))
    w1, b1 = linear(keys[-3], input_dim, (input_dim, hidden_dim), (1, hidden_dim))
    w2, b2 = linear(keys[-2], hidden_dim, (hidden_dim, input_dim), (1, input_dim))
    wout, bout = linear(keys[-1], input_dim, (input_dim, output_dim), (1, output_dim))
    return dict(
        attn_layers=attn_layers,
        ln1_g=jnp.ones((1, input_dim), dtype), ln1_b=jnp.zeros((1, input_dim), dtype),
        ln2_g=jnp.ones((1, input_dim), dtype), ln2_b=jnp.zeros((1, input_dim), dtype),
        w1=w1, b1=b1, w2=w2, b2=b2, wout=wout, bout=bout)


# ----------------------------------------------------------------------------
# Pure-JAX reference (mirrors the PyTorch module, eval mode)
# ----------------------------------------------------------------------------
def transformer_reference(x, params, *, num_heads):
    if x.ndim == 2:
        x = x[:, None, :]
    bsz, seq, d = x.shape
    hd = d // num_heads

    def layernorm(t, g, b):
        mu = jnp.mean(t, axis=-1, keepdims=True)
        var = jnp.mean(jnp.square(t - mu), axis=-1, keepdims=True)
        return (t - mu) * jax.lax.rsqrt(var + _LN_EPS) * g + b

    for lp in params["attn_layers"]:
        residual = x
        xn = layernorm(x, params["ln1_g"], params["ln1_b"])
        qkv = xn @ lp["wqkv"] + lp["bqkv"]
        qkv = qkv.reshape(bsz, seq, 3, num_heads, hd).transpose(2, 0, 3, 1, 4)
        q, k, v = qkv[0], qkv[1], qkv[2]
        attn = (q @ jnp.swapaxes(k, -1, -2)) * (hd ** -0.5)
        attn = jax.nn.softmax(attn, axis=-1)
        ctx = (attn @ v).transpose(0, 2, 1, 3).reshape(bsz, seq, d)
        x = residual + (ctx @ lp["wo"] + lp["bo"])
    residual = x
    xn = layernorm(x, params["ln2_g"], params["ln2_b"])
    h = xn @ params["w1"] + params["b1"]
    h = 0.5 * h * (1.0 + jax.lax.erf(h * (1.0 / math.sqrt(2.0))))
    x = residual + (h @ params["w2"] + params["b2"])
    x = x.mean(axis=1)
    return x @ params["wout"] + params["bout"]


if __name__ == "__main__":
    batch, seq, input_dim = 2, 8, 32
    num_heads, hidden_dim, output_dim, num_layers = 4, 64, 8, 1

    key = jax.random.PRNGKey(0)
    kx, kp = jax.random.split(key)
    x = jax.random.normal(kx, (batch, seq, input_dim), dtype=jnp.float32)
    params = init_transformer_params(kp, input_dim, output_dim, num_heads,
                                     hidden_dim, num_layers)

    y = transformer_forward(x, params, num_heads=num_heads)
    y = jax.block_until_ready(y)

    y_ref = transformer_reference(x, params, num_heads=num_heads)
    assert y.shape == (batch, output_dim)
    err = float(jnp.max(jnp.abs(y - y_ref)))
    # Tolerance leaves margin for the EUP approx-reciprocal (Newton-refined) softmax path.
    assert jnp.allclose(y, y_ref, atol=5e-4, rtol=5e-4), f"mismatch vs reference (max abs err {err})"

    print("KERNEL_OK")
</pallas_src>

<mosaic_0001>
module attributes {stable_mosaic.version = 11 : i64} {
  func.func @attn_layer_kernel(%arg0: i32, %arg1: memref<1x8x32xf32, #tpu.memory_space<vmem>>, %arg2: memref<1x32xf32, #tpu.memory_space<vmem>>, %arg3: memref<1x32xf32, #tpu.memory_space<vmem>>, %arg4: memref<32x32xf32, #tpu.memory_space<vmem>>, %arg5: memref<1x32xf32, #tpu.memory_space<vmem>>, %arg6: memref<32x32xf32, #tpu.memory_space<vmem>>, %arg7: memref<1x32xf32, #tpu.memory_space<vmem>>, %arg8: memref<32x32xf32, #tpu.memory_space<vmem>>, %arg9: memref<1x32xf32, #tpu.memory_space<vmem>>, %arg10: memref<32x32xf32, #tpu.memory_space<vmem>>, %arg11: memref<1x32xf32, #tpu.memory_space<vmem>>, %arg12: memref<1x8x32xf32, #tpu.memory_space<vmem>>) attributes {dimension_semantics = [#tpu.dimension_semantics<parallel>], iteration_bounds = array<i64: 2>, scalar_prefetch = 0 : i64, scratch_operands = 0 : i64, tpu.core_type = #tpu.core_type<tc>, window_params = [{transform_indices = @transform_0, window_bounds = array<i64: 1, 8, 32>}, {pipeline_mode = #tpu.pipeline_mode<synchronous>, transform_indices = @transform_1, window_bounds = array<i64: 1, 32>}, {pipeline_mode = #tpu.pipeline_mode<synchronous>, transform_indices = @transform_2, window_bounds = array<i64: 1, 32>}, {pipeline_mode = #tpu.pipeline_mode<synchronous>, transform_indices = @transform_3, window_bounds = array<i64: 32, 32>}, {pipeline_mode = #tpu.pipeline_mode<synchronous>, transform_indices = @transform_4, window_bounds = array<i64: 1, 32>}, {pipeline_mode = #tpu.pipeline_mode<synchronous>, transform_indices = @transform_5, window_bounds = array<i64: 32, 32>}, {pipeline_mode = #tpu.pipeline_mode<synchronous>, transform_indices = @transform_6, window_bounds = array<i64: 1, 32>}, {pipeline_mode = #tpu.pipeline_mode<synchronous>, transform_indices = @transform_7, window_bounds = array<i64: 32, 32>}, {pipeline_mode = #tpu.pipeline_mode<synchronous>, transform_indices = @transform_8, window_bounds = array<i64: 1, 32>}, {pipeline_mode = #tpu.pipeline_mode<synchronous>, transform_indices = @transform_9, window_bounds = array<i64: 32, 32>}, {pipeline_mode = #tpu.pipeline_mode<synchronous>, transform_indices = @transform_10, window_bounds = array<i64: 1, 32>}, {transform_indices = @transform_11, window_bounds = array<i64: 1, 8, 32>}]} {
    %c0 = arith.constant 0 : index
    %c0_0 = arith.constant 0 : index
    %c0_1 = arith.constant 0 : index
    %0 = vector.load %arg1[%c0, %c0_0, %c0_1] : memref<1x8x32xf32, #tpu.memory_space<vmem>>, vector<1x8x32xf32>
    %1 = vector.shape_cast %0 : vector<1x8x32xf32> to vector<8x32xf32>
    %c0_2 = arith.constant 0 : index
    %c0_3 = arith.constant 0 : index
    %2 = vector.load %arg2[%c0_2, %c0_3] : memref<1x32xf32, #tpu.memory_space<vmem>>, vector<1x32xf32>
    %c0_4 = arith.constant 0 : index
    %c0_5 = arith.constant 0 : index
    %3 = vector.load %arg3[%c0_4, %c0_5] : memref<1x32xf32, #tpu.memory_space<vmem>>, vector<1x32xf32>
    %cst = arith.constant dense<0.000000e+00> : vector<8xf32>
    %4 = vector.multi_reduction <add>, %1, %cst [1] : vector<8x32xf32> to vector<8xf32>
    %5 = vector.shape_cast %4 : vector<8xf32> to vector<8x1xf32>
    %cst_6 = arith.constant 3.200000e+01 : f32
    %6 = vector.broadcast %cst_6 : f32 to vector<8x1xf32>
    %7 = arith.divf %5, %6 : vector<8x1xf32>
    %8 = vector.broadcast %7 : vector<8x1xf32> to vector<8x32xf32>
    %9 = arith.subf %1, %8 : vector<8x32xf32>
    %10 = arith.mulf %9, %9 : vector<8x32xf32>
    %cst_7 = arith.constant dense<0.000000e+00> : vector<8xf32>
    %11 = vector.multi_reduction <add>, %10, %cst_7 [1] : vector<8x32xf32> to vector<8xf32>
    %12 = vector.shape_cast %11 : vector<8xf32> to vector<8x1xf32>
    %cst_8 = arith.constant 3.200000e+01 : f32
    %13 = vector.broadcast %cst_8 : f32 to vector<8x1xf32>
    %14 = arith.divf %12, %13 : vector<8x1xf32>
    %15 = vector.broadcast %7 : vector<8x1xf32> to vector<8x32xf32>
    %16 = arith.subf %1, %15 : vector<8x32xf32>
    %cst_9 = arith.constant 9.99999974E-6 : f32
    %17 = vector.broadcast %cst_9 : f32 to vector<8x1xf32>
    %18 = arith.addf %14, %17 : vector<8x1xf32>
    %19 = math.rsqrt %18 : vector<8x1xf32>
    %20 = vector.broadcast %19 : vector<8x1xf32> to vector<8x32xf32>
    %21 = arith.mulf %16, %20 : vector<8x32xf32>
    %22 = vector.broadcast %2 : vector<1x32xf32> to vector<8x32xf32>
    %23 = arith.mulf %21, %22 : vector<8x32xf32>
    %24 = vector.broadcast %3 : vector<1x32xf32> to vector<8x32xf32>
    %25 = arith.addf %23, %24 : vector<8x32xf32>
    %c0_10 = arith.constant 0 : index
    %c0_11 = arith.constant 0 : index
    %26 = vector.load %arg4[%c0_10, %c0_11] : memref<32x32xf32, #tpu.memory_space<vmem>>, vector<32x32xf32>
    %cst_12 = arith.constant dense<0.000000e+00> : vector<8x32xf32>
    %27 = tpu.matmul %25, %26, %cst_12 {dimension_numbers = #tpu.dot_dimension_numbers<[1], [0], [0], [1], [0, 0, 1, 1], [], []>} : vector<8x32xf32>, vector<32x32xf32>, vector<8x32xf32> -> vector<8x32xf32>
    %c0_13 = arith.constant 0 : index
    %c0_14 = arith.constant 0 : index
    %28 = vector.load %arg5[%c0_13, %c0_14] : memref<1x32xf32, #tpu.memory_space<vmem>>, vector<1x32xf32>
    %29 = vector.broadcast %28 : vector<1x32xf32> to vector<8x32xf32>
    %30 = arith.addf %27, %29 : vector<8x32xf32>
    %c0_15 = arith.constant 0 : index
    %c0_16 = arith.constant 0 : index
    %31 = vector.load %arg6[%c0_15, %c0_16] : memref<32x32xf32, #tpu.memory_space<vmem>>, vector<32x32xf32>
    %cst_17 = arith.constant dense<0.000000e+00> : vector<8x32xf32>
    %32 = tpu.matmul %25, %31, %cst_17 {dimension_numbers = #tpu.dot_dimension_numbers<[1], [0], [0], [1], [0, 0, 1, 1], [], []>} : vector<8x32xf32>, vector<32x32xf32>, vector<8x32xf32> -> vector<8x32xf32>
    %c0_18 = arith.constant 0 : index
    %c0_19 = arith.constant 0 : index
    %33 = vector.load %arg7[%c0_18, %c0_19] : memref<1x32xf32, #tpu.memory_space<vmem>>, vector<1x32xf32>
    %34 = vector.broadcast %33 : vector<1x32xf32> to vector<8x32xf32>
    %35 = arith.addf %32, %34 : vector<8x32xf32>
    %c0_20 = arith.constant 0 : index
    %c0_21 = arith.constant 0 : index
    %36 = vector.load %arg8[%c0_20, %c0_21] : memref<32x32xf32, #tpu.memory_space<vmem>>, vector<32x32xf32>
    %cst_22 = arith.constant dense<0.000000e+00> : vector<8x32xf32>
    %37 = tpu.matmul %25, %36, %cst_22 {dimension_numbers = #tpu.dot_dimension_numbers<[1], [0], [0], [1], [0, 0, 1, 1], [], []>} : vector<8x32xf32>, vector<32x32xf32>, vector<8x32xf32> -> vector<8x32xf32>
    %c0_23 = arith.constant 0 : index
    %c0_24 = arith.constant 0 : index
    %38 = vector.load %arg9[%c0_23, %c0_24] : memref<1x32xf32, #tpu.memory_space<vmem>>, vector<1x32xf32>
    %39 = vector.broadcast %38 : vector<1x32xf32> to vector<8x32xf32>
    %40 = arith.addf %37, %39 : vector<8x32xf32>
    %41 = vector.shape_cast %30 : vector<8x32xf32> to vector<1x8x32xf32>
    %42 = vector.shape_cast %35 : vector<8x32xf32> to vector<1x8x32xf32>
    %43 = vector.shape_cast %40 : vector<8x32xf32> to vector<1x8x32xf32>
    %44 = vector.extract_strided_slice %41 {offsets = [0, 0, 0], sizes = [1, 8, 8], strides = [1, 1, 1]} : vector<1x8x32xf32> to vector<1x8x8xf32>
    %45 = vector.extract_strided_slice %42 {offsets = [0, 0, 0], sizes = [1, 8, 8], strides = [1, 1, 1]} : vector<1x8x32xf32> to vector<1x8x8xf32>
    %46 = vector.extract_strided_slice %43 {offsets = [0, 0, 0], sizes = [1, 8, 8], strides = [1, 1, 1]} : vector<1x8x32xf32> to vector<1x8x8xf32>
    "tpu.trace_start"() <{level = 10 : i32, message = "bqe,bke->bqk"}> : () -> ()
    %cst_25 = arith.constant dense<0.000000e+00> : vector<1x8x8xf32>
    %47 = tpu.matmul %44, %45, %cst_25 {dimension_numbers = #tpu.dot_dimension_numbers<[2], [2], [1], [1], [0, 0, 0, 1, 1, 1], [0], [0]>} : vector<1x8x8xf32>, vector<1x8x8xf32>, vector<1x8x8xf32> -> vector<1x8x8xf32>
    "tpu.trace_stop"() : () -> ()
    %cst_26 = arith.constant 0.353553385 : f32
    %48 = vector.broadcast %cst_26 : f32 to vector<1x8x8xf32>
    %49 = arith.mulf %47, %48 : vector<1x8x8xf32>
    %cst_27 = arith.constant dense<0xFF800000> : vector<1x8xf32>
    %50 = vector.multi_reduction <maximumf>, %49, %cst_27 [2] : vector<1x8x8xf32> to vector<1x8xf32>
    %51 = vector.shape_cast %50 : vector<1x8xf32> to vector<1x8x1xf32>
    %52 = vector.broadcast %51 : vector<1x8x1xf32> to vector<1x8x8xf32>
    %53 = arith.subf %49, %52 : vector<1x8x8xf32>
    %54 = math.exp %53 : vector<1x8x8xf32>
    %cst_28 = arith.constant dense<0.000000e+00> : vector<1x8xf32>
    %55 = vector.multi_reduction <add>, %54, %cst_28 [2] : vector<1x8x8xf32> to vector<1x8xf32>
    %56 = vector.shape_cast %55 : vector<1x8xf32> to vector<1x8x1xf32>
    %57 = tpu.reciprocal %56 {approx = true} : vector<1x8x1xf32> -> vector<1x8x1xf32>
    %58 = arith.mulf %56, %57 : vector<1x8x1xf32>
    %cst_29 = arith.constant 2.000000e+00 : f32
    %59 = vector.broadcast %cst_29 : f32 to vector<1x8x1xf32>
    %60 = arith.subf %59, %58 : vector<1x8x1xf32>
    %61 = arith.mulf %57, %60 : vector<1x8x1xf32>
    %62 = vector.broadcast %61 : vector<1x8x1xf32> to vector<1x8x8xf32>
    %63 = arith.mulf %54, %62 : vector<1x8x8xf32>
    "tpu.trace_start"() <{level = 10 : i32, message = "bqk,bke->bqe"}> : () -> ()
    %cst_30 = arith.constant dense<0.000000e+00> : vector<1x8x8xf32>
    %64 = tpu.matmul %63, %46, %cst_30 {dimension_numbers = #tpu.dot_dimension_numbers<[2], [1], [1], [2], [0, 0, 0, 1, 1, 2], [0], [0]>} : vector<1x8x8xf32>, vector<1x8x8xf32>, vector<1x8x8xf32> -> vector<1x8x8xf32>
    "tpu.trace_stop"() : () -> ()
    %65 = vector.extract_strided_slice %41 {offsets = [0, 0, 8], sizes = [1, 8, 8], strides = [1, 1, 1]} : vector<1x8x32xf32> to vector<1x8x8xf32>
    %66 = vector.extract_strided_slice %42 {offsets = [0, 0, 8], sizes = [1, 8, 8], strides = [1, 1, 1]} : vector<1x8x32xf32> to vector<1x8x8xf32>
    %67 = vector.extract_strided_slice %43 {offsets = [0, 0, 8], sizes = [1, 8, 8], strides = [1, 1, 1]} : vector<1x8x32xf32> to vector<1x8x8xf32>
    "tpu.trace_start"() <{level = 10 : i32, message = "bqe,bke->bqk"}> : () -> ()
    %cst_31 = arith.constant dense<0.000000e+00> : vector<1x8x8xf32>
    %68 = tpu.matmul %65, %66, %cst_31 {dimension_numbers = #tpu.dot_dimension_numbers<[2], [2], [1], [1], [0, 0, 0, 1, 1, 1], [0], [0]>} : vector<1x8x8xf32>, vector<1x8x8xf32>, vector<1x8x8xf32> -> vector<1x8x8xf32>
    "tpu.trace_stop"() : () -> ()
    %cst_32 = arith.constant 0.353553385 : f32
    %69 = vector.broadcast %cst_32 : f32 to vector<1x8x8xf32>
    %70 = arith.mulf %68, %69 : vector<1x8x8xf32>
    %cst_33 = arith.constant dense<0xFF800000> : vector<1x8xf32>
    %71 = vector.multi_reduction <maximumf>, %70, %cst_33 [2] : vector<1x8x8xf32> to vector<1x8xf32>
    %72 = vector.shape_cast %71 : vector<1x8xf32> to vector<1x8x1xf32>
    %73 = vector.broadcast %72 : vector<1x8x1xf32> to vector<1x8x8xf32>
    %74 = arith.subf %70, %73 : vector<1x8x8xf32>
    %75 = math.exp %74 : vector<1x8x8xf32>
    %cst_34 = arith.constant dense<0.000000e+00> : vector<1x8xf32>
    %76 = vector.multi_reduction <add>, %75, %cst_34 [2] : vector<1x8x8xf32> to vector<1x8xf32>
    %77 = vector.shape_cast %76 : vector<1x8xf32> to vector<1x8x1xf32>
    %78 = tpu.reciprocal %77 {approx = true} : vector<1x8x1xf32> -> vector<1x8x1xf32>
    %79 = arith.mulf %77, %78 : vector<1x8x1xf32>
    %cst_35 = arith.constant 2.000000e+00 : f32
    %80 = vector.broadcast %cst_35 : f32 to vector<1x8x1xf32>
    %81 = arith.subf %80, %79 : vector<1x8x1xf32>
    %82 = arith.mulf %78, %81 : vector<1x8x1xf32>
    %83 = vector.broadcast %82 : vector<1x8x1xf32> to vector<1x8x8xf32>
    %84 = arith.mulf %75, %83 : vector<1x8x8xf32>
    "tpu.trace_start"() <{level = 10 : i32, message = "bqk,bke->bqe"}> : () -> ()
    %cst_36 = arith.constant dense<0.000000e+00> : vector<1x8x8xf32>
    %85 = tpu.matmul %84, %67, %cst_36 {dimension_numbers = #tpu.dot_dimension_numbers<[2], [1], [1], [2], [0, 0, 0, 1, 1, 2], [0], [0]>} : vector<1x8x8xf32>, vector<1x8x8xf32>, vector<1x8x8xf32> -> vector<1x8x8xf32>
    "tpu.trace_stop"() : () -> ()
    %86 = vector.extract_strided_slice %41 {offsets = [0, 0, 16], sizes = [1, 8, 8], strides = [1, 1, 1]} : vector<1x8x32xf32> to vector<1x8x8xf32>
    %87 = vector.extract_strided_slice %42 {offsets = [0, 0, 16], sizes = [1, 8, 8], strides = [1, 1, 1]} : vector<1x8x32xf32> to vector<1x8x8xf32>
    %88 = vector.extract_strided_slice %43 {offsets = [0, 0, 16], sizes = [1, 8, 8], strides = [1, 1, 1]} : vector<1x8x32xf32> to vector<1x8x8xf32>
    "tpu.trace_start"() <{level = 10 : i32, message = "bqe,bke->bqk"}> : () -> ()
    %cst_37 = arith.constant dense<0.000000e+00> : vector<1x8x8xf32>
    %89 = tpu.matmul %86, %87, %cst_37 {dimension_numbers = #tpu.dot_dimension_numbers<[2], [2], [1], [1], [0, 0, 0, 1, 1, 1], [0], [0]>} : vector<1x8x8xf32>, vector<1x8x8xf32>, vector<1x8x8xf32> -> vector<1x8x8xf32>
    "tpu.trace_stop"() : () -> ()
    %cst_38 = arith.constant 0.353553385 : f32
    %90 = vector.broadcast %cst_38 : f32 to vector<1x8x8xf32>
    %91 = arith.mulf %89, %90 : vector<1x8x8xf32>
    %cst_39 = arith.constant dense<0xFF800000> : vector<1x8xf32>
    %92 = vector.multi_reduction <maximumf>, %91, %cst_39 [2] : vector<1x8x8xf32> to vector<1x8xf32>
    %93 = vector.shape_cast %92 : vector<1x8xf32> to vector<1x8x1xf32>
    %94 = vector.broadcast %93 : vector<1x8x1xf32> to vector<1x8x8xf32>
    %95 = arith.subf %91, %94 : vector<1x8x8xf32>
    %96 = math.exp %95 : vector<1x8x8xf32>
    %cst_40 = arith.constant dense<0.000000e+00> : vector<1x8xf32>
    %97 = vector.multi_reduction <add>, %96, %cst_40 [2] : vector<1x8x8xf32> to vector<1x8xf32>
    %98 = vector.shape_cast %97 : vector<1x8xf32> to vector<1x8x1xf32>
    %99 = tpu.reciprocal %98 {approx = true} : vector<1x8x1xf32> -> vector<1x8x1xf32>
    %100 = arith.mulf %98, %99 : vector<1x8x1xf32>
    %cst_41 = arith.constant 2.000000e+00 : f32
    %101 = vector.broadcast %cst_41 : f32 to vector<1x8x1xf32>
    %102 = arith.subf %101, %100 : vector<1x8x1xf32>
    %103 = arith.mulf %99, %102 : vector<1x8x1xf32>
    %104 = vector.broadcast %103 : vector<1x8x1xf32> to vector<1x8x8xf32>
    %105 = arith.mulf %96, %104 : vector<1x8x8xf32>
    "tpu.trace_start"() <{level = 10 : i32, message = "bqk,bke->bqe"}> : () -> ()
    %cst_42 = arith.constant dense<0.000000e+00> : vector<1x8x8xf32>
    %106 = tpu.matmul %105, %88, %cst_42 {dimension_numbers = #tpu.dot_dimension_numbers<[2], [1], [1], [2], [0, 0, 0, 1, 1, 2], [0], [0]>} : vector<1x8x8xf32>, vector<1x8x8xf32>, vector<1x8x8xf32> -> vector<1x8x8xf32>
    "tpu.trace_stop"() : () -> ()
    %107 = vector.extract_strided_slice %41 {offsets = [0, 0, 24], sizes = [1, 8, 8], strides = [1, 1, 1]} : vector<1x8x32xf32> to vector<1x8x8xf32>
    %108 = vector.extract_strided_slice %42 {offsets = [0, 0, 24], sizes = [1, 8, 8], strides = [1, 1, 1]} : vector<1x8x32xf32> to vector<1x8x8xf32>
    %109 = vector.extract_strided_slice %43 {offsets = [0, 0, 24], sizes = [1, 8, 8], strides = [1, 1, 1]} : vector<1x8x32xf32> to vector<1x8x8xf32>
    "tpu.trace_start"() <{level = 10 : i32, message = "bqe,bke->bqk"}> : () -> ()
    %cst_43 = arith.constant dense<0.000000e+00> : vector<1x8x8xf32>
    %110 = tpu.matmul %107, %108, %cst_43 {dimension_numbers = #tpu.dot_dimension_numbers<[2], [2], [1], [1], [0, 0, 0, 1, 1, 1], [0], [0]>} : vector<1x8x8xf32>, vector<1x8x8xf32>, vector<1x8x8xf32> -> vector<1x8x8xf32>
    "tpu.trace_stop"() : () -> ()
    %cst_44 = arith.constant 0.353553385 : f32
    %111 = vector.broadcast %cst_44 : f32 to vector<1x8x8xf32>
    %112 = arith.mulf %110, %111 : vector<1x8x8xf32>
    %cst_45 = arith.constant dense<0xFF800000> : vector<1x8xf32>
    %113 = vector.multi_reduction <maximumf>, %112, %cst_45 [2] : vector<1x8x8xf32> to vector<1x8xf32>
    %114 = vector.shape_cast %113 : vector<1x8xf32> to vector<1x8x1xf32>
    %115 = vector.broadcast %114 : vector<1x8x1xf32> to vector<1x8x8xf32>
    %116 = arith.subf %112, %115 : vector<1x8x8xf32>
    %117 = math.exp %116 : vector<1x8x8xf32>
    %cst_46 = arith.constant dense<0.000000e+00> : vector<1x8xf32>
    %118 = vector.multi_reduction <add>, %117, %cst_46 [2] : vector<1x8x8xf32> to vector<1x8xf32>
    %119 = vector.shape_cast %118 : vector<1x8xf32> to vector<1x8x1xf32>
    %120 = tpu.reciprocal %119 {approx = true} : vector<1x8x1xf32> -> vector<1x8x1xf32>
    %121 = arith.mulf %119, %120 : vector<1x8x1xf32>
    %cst_47 = arith.constant 2.000000e+00 : f32
    %122 = vector.broadcast %cst_47 : f32 to vector<1x8x1xf32>
    %123 = arith.subf %122, %121 : vector<1x8x1xf32>
    %124 = arith.mulf %120, %123 : vector<1x8x1xf32>
    %125 = vector.broadcast %124 : vector<1x8x1xf32> to vector<1x8x8xf32>
    %126 = arith.mulf %117, %125 : vector<1x8x8xf32>
    "tpu.trace_start"() <{level = 10 : i32, message = "bqk,bke->bqe"}> : () -> ()
    %cst_48 = arith.constant dense<0.000000e+00> : vector<1x8x8xf32>
    %127 = tpu.matmul %126, %109, %cst_48 {dimension_numbers = #tpu.dot_dimension_numbers<[2], [1], [1], [2], [0, 0, 0, 1, 1, 2], [0], [0]>} : vector<1x8x8xf32>, vector<1x8x8xf32>, vector<1x8x8xf32> -> vector<1x8x8xf32>
    "tpu.trace_stop"() : () -> ()
    %128 = tpu.concatenate %64, %85, %106, %127 in 2 : vector<1x8x8xf32>, vector<1x8x8xf32>, vector<1x8x8xf32>, vector<1x8x8xf32> -> vector<1x8x32xf32>
    %129 = vector.shape_cast %128 : vector<1x8x32xf32> to vector<8x32xf32>
    %c0_49 = arith.constant 0 : index
    %c0_50 = arith.constant 0 : index
    %130 = vector.load %arg10[%c0_49, %c0_50] : memref<32x32xf32, #tpu.memory_space<vmem>>, vector<32x32xf32>
    %cst_51 = arith.constant dense<0.000000e+00> : vector<8x32xf32>
    %131 = tpu.matmul %129, %130, %cst_51 {dimension_numbers = #tpu.dot_dimension_numbers<[1], [0], [0], [1], [0, 0, 1, 1], [], []>} : vector<8x32xf32>, vector<32x32xf32>, vector<8x32xf32> -> vector<8x32xf32>
    %c0_52 = arith.constant 0 : index
    %c0_53 = arith.constant 0 : index
    %132 = vector.load %arg11[%c0_52, %c0_53] : memref<1x32xf32, #tpu.memory_space<vmem>>, vector<1x32xf32>
    %133 = vector.broadcast %132 : vector<1x32xf32> to vector<8x32xf32>
    %134 = arith.addf %131, %133 : vector<8x32xf32>
    %135 = arith.addf %1, %134 : vector<8x32xf32>
    %136 = vector.shape_cast %135 : vector<8x32xf32> to vector<1x8x32xf32>
    %c0_54 = arith.constant 0 : index
    %c0_55 = arith.constant 0 : index
    %c0_56 = arith.constant 0 : index
    %137 = vector.load %arg12[%c0_54, %c0_55, %c0_56] : memref<1x8x32xf32, #tpu.memory_space<vmem>>, vector<1x8x32xf32>
    tpu.vector_store %arg12[%c0_54, %c0_55, %c0_56], %136 {strides = array<i32>} : memref<1x8x32xf32, #tpu.memory_space<vmem>>, vector<1x8x32xf32>,
    return
  }
  func.func @transform_0(%arg0: i32) -> (i32, i32, i32) {
    %c0_i32 = arith.constant 0 : i32
    %c0_i32_0 = arith.constant 0 : i32
    %c0_i32_1 = arith.constant 0 : i32
    return %arg0, %c0_i32, %c0_i32_0 : i32, i32, i32
  }
  func.func @transform_1(%arg0: i32) -> (i32, i32) {
    %c0_i32 = arith.constant 0 : i32
    %c0_i32_0 = arith.constant 0 : i32
    %c0_i32_1 = arith.constant 0 : i32
    return %c0_i32, %c0_i32_0 : i32, i32
  }
  func.func @transform_2(%arg0: i32) -> (i32, i32) {
    %c0_i32 = arith.constant 0 : i32
    %c0_i32_0 = arith.constant 0 : i32
    %c0_i32_1 = arith.constant 0 : i32
    return %c0_i32, %c0_i32_0 : i32, i32
  }
  func.func @transform_3(%arg0: i32) -> (i32, i32) {
    %c0_i32 = arith.constant 0 : i32
    %c0_i32_0 = arith.constant 0 : i32
    %c0_i32_1 = arith.constant 0 : i32
    return %c0_i32, %c0_i32_0 : i32, i32
  }
  func.func @transform_4(%arg0: i32) -> (i32, i32) {
    %c0_i32 = arith.constant 0 : i32
    %c0_i32_0 = arith.constant 0 : i32
    %c0_i32_1 = arith.constant 0 : i32
    return %c0_i32, %c0_i32_0 : i32, i32
  }
  func.func @transform_5(%arg0: i32) -> (i32, i32) {
    %c0_i32 = arith.constant 0 : i32
    %c0_i32_0 = arith.constant 0 : i32
    %c0_i32_1 = arith.constant 0 : i32
    return %c0_i32, %c0_i32_0 : i32, i32
  }
  func.func @transform_6(%arg0: i32) -> (i32, i32) {
    %c0_i32 = arith.constant 0 : i32
    %c0_i32_0 = arith.constant 0 : i32
    %c0_i32_1 = arith.constant 0 : i32
    return %c0_i32, %c0_i32_0 : i32, i32
  }
  func.func @transform_7(%arg0: i32) -> (i32, i32) {
    %c0_i32 = arith.constant 0 : i32
    %c0_i32_0 = arith.constant 0 : i32
    %c0_i32_1 = arith.constant 0 : i32
    return %c0_i32, %c0_i32_0 : i32, i32
  }
  func.func @transform_8(%arg0: i32) -> (i32, i32) {
    %c0_i32 = arith.constant 0 : i32
    %c0_i32_0 = arith.constant 0 : i32
    %c0_i32_1 = arith.constant 0 : i32
    return %c0_i32, %c0_i32_0 : i32, i32
  }
  func.func @transform_9(%arg0: i32) -> (i32, i32) {
    %c0_i32 = arith.constant 0 : i32
    %c0_i32_0 = arith.constant 0 : i32
    %c0_i32_1 = arith.constant 0 : i32
    return %c0_i32, %c0_i32_0 : i32, i32
  }
  func.func @transform_10(%arg0: i32) -> (i32, i32) {
    %c0_i32 = arith.constant 0 : i32
    %c0_i32_0 = arith.constant 0 : i32
    %c0_i32_1 = arith.constant 0 : i32
    return %c0_i32, %c0_i32_0 : i32, i32
  }
  func.func @transform_11(%arg0: i32) -> (i32, i32, i32) {
    %c0_i32 = arith.constant 0 : i32
    %c0_i32_0 = arith.constant 0 : i32
    %c0_i32_1 = arith.constant 0 : i32
    return %arg0, %c0_i32, %c0_i32_0 : i32, i32, i32
  }
}

</mosaic_0001>

<llo_original>
// kernel: tpu_custom_call.1
$region0: #{tpu_custom_call.1}
  #allocation0 [shape = 'u32[]', space=smem, size = 0x4, offset = 0x4, fixed_abs, tag = 'smem constant byte address 0x4 - core index']
  #allocation1 [shape = 'u32[144,128]{1,0:T(1,128)}', space=vmem, size = 0x12000, scoped, tag = 'internal scratch']
  %s0 = inlined_call_operand.hbm [shape: f32[2,8,32], index: 0, kind: input, shape index: {}]
  %s1 = inlined_call_operand.vmem [shape: f32[1,32], index: 1, kind: input, shape index: {}]
  %s2 = inlined_call_operand.vmem [shape: f32[1,32], index: 2, kind: input, shape index: {}]
  %s3 = inlined_call_operand.hbm [shape: f32[32,32], index: 3, kind: input, shape index: {}]
  %s4 = inlined_call_operand.vmem [shape: f32[1,32], index: 4, kind: input, shape index: {}]
  %s5 = inlined_call_operand.hbm [shape: f32[32,32], index: 5, kind: input, shape index: {}]
  %s6 = inlined_call_operand.vmem [shape: f32[1,32], index: 6, kind: input, shape index: {}]
  %s7 = inlined_call_operand.hbm [shape: f32[32,32], index: 7, kind: input, shape index: {}]
  %s8 = inlined_call_operand.vmem [shape: f32[1,32], index: 8, kind: input, shape index: {}]
  %s9 = inlined_call_operand.hbm [shape: f32[32,32], index: 9, kind: input, shape index: {}]
  %s10 = inlined_call_operand.vmem [shape: f32[1,32], index: 10, kind: input, shape index: {}]
  %s11 = inlined_call_operand.hbm [shape: f32[2,8,32], index: 11, kind: output, shape index: {}]
  %s12 = sld [smem:[#allocation0]]
  $region97: #{tpu_custom_call.1} parent=0
    _
  %s14 = ssub.s32 1, %s12
  %s15 = scalar_select 0, %s14, %s12
  $region1: #{tpu_custom_call.1} parent=0
    #allocation2 [shape = 'u8[8192]{0}', space=vmem, size = 0x2000, scoped, tag = 'input window, operand 0']
    #allocation3 [shape = 's32[2]{0}', space=sflag, size = 0x8, scoped, tag = 'scoped memory for tpu_custom_call.1']
    #allocation4 [shape = 's32[2]{0}', space=sflag, size = 0x8, scoped, tag = 'scoped memory for tpu_custom_call.1']
    #allocation5 [shape = 'u8[16384]{0}', space=vmem, size = 0x4000, scoped, tag = 'input window, operand 3, single buffered']
    #allocation6 [shape = 's32[1]{0}', space=sflag, size = 0x4, scoped, tag = 'scoped memory for tpu_custom_call.1']
    #allocation7 [shape = 'u8[16384]{0}', space=vmem, size = 0x4000, scoped, tag = 'input window, operand 5, single buffered']
    #allocation8 [shape = 'u8[16384]{0}', space=vmem, size = 0x4000, scoped, tag = 'input window, operand 7, single buffered']
    #allocation9 [shape = 's32[1]{0}', space=sflag, size = 0x4, scoped, tag = 'scoped memory for tpu_custom_call.1']
    #allocation10 [shape = 'u8[16384]{0}', space=vmem, size = 0x4000, scoped, tag = 'input window, operand 9, single buffered']
    #allocation11 [shape = 'u8[8192]{0}', space=vmem, size = 0x2000, scoped, tag = 'output window, operand 0']
    %16 = vsyncpa [#allocation3], 0
    %s17 = scalar_lea.sflag [#allocation3], 1
    %18 = vsyncpa %s17, 0
    %19 = vsyncpa [#allocation6], 0
    %20 = vsyncpa [#allocation9], 0
    %21 = vsyncpa [#allocation4], 0
    %s22 = scalar_lea.sflag [#allocation4], 1
    %23 = vsyncpa %s22, 0
    loop: start=0, step=1, limit=4
    $region2: #{tpu_custom_call.1} parent=1 // loop_pre_header
      _
    $region3: #{tpu_custom_call.1} parent=1 // loop_header
      %s25 = sphi 0, %s29
      %p26 = scmp.ge.s32.totalorder %s25, 4
      %s35 = sphi 0, %s37
      %s38 = sphi 0, %s35
      %s39 = sphi 0, %s38
      %s55 = sphi 0, %s39
      %s59 = sphi 0, %s59
      %s61 = sphi 0, %s59
      %s62 = sphi 0, %s61
      %s76 = sphi 0, %s62
      %s80 = sphi 0, %s80
      %s82 = sphi 0, %s80
      %s83 = sphi 0, %s82
      %s97 = sphi 0, %s83
      %s101 = sphi 0, %s101
      %s103 = sphi 0, %s101
      %s104 = sphi 0, %s103
      %s118 = sphi 0, %s104
      %s122 = sphi 0, %s122
      %s124 = sphi 0, %s122
      %s125 = sphi 0, %s124
      %s139 = sphi 0, %s125
      %s143 = sphi 0, %s143
      %s145 = sphi 0, %s143
      %s146 = sphi 0, %s145
      %s160 = sphi 0, %s146
      %s164 = sphi 0, %s164
      %s166 = sphi 0, %s164
      %s167 = sphi 0, %s166
      %s181 = sphi 0, %s167
      %s185 = sphi 0, %s185
      %s187 = sphi 0, %s185
      %s188 = sphi 0, %s187
      %s202 = sphi 0, %s188
      %s206 = sphi 0, %s206
      %s208 = sphi 0, %s206
      %s209 = sphi 0, %s208
      %s223 = sphi 0, %s209
      %s227 = sphi 0, %s227
      %s229 = sphi 0, %s227
      %s230 = sphi 0, %s229
      %s244 = sphi 0, %s230
      %s248 = sphi 0, %s248
      %s250 = sphi 0, %s248
      %s251 = sphi 0, %s250
      %s265 = sphi 0, %s251
      %s271 = sphi 0, %s273
      %s274 = sphi 0, %s271
      %s275 = sphi 0, %s274
      %s291 = sphi 0, %s275
    $region4: #{tpu_custom_call.1} parent=1 // loop_header_branch
      %28 = sbr.rel (%p26) target = $region8
    $region5: #{tpu_custom_call.1} parent=1 // loop_body
      %s30 = ssub.s32 %s25, 1
      %s31 = ssub.s32 %s25, 2
      %s32 = sadd.s32 %s25, 1
      %s33 = ssub.s32 %s25, %s32
      %p34 = scmp.eq.s32.totalorder %s33, 0
      %s36 = sadd.s32 %s35, 1
      %s37 = scalar_select %p34, %s35, %s36
      %p40 = pneg %p34
      %p41 = scmp.eq.s32.totalorder %s25, 1
      %p42 = por %p40, %p41
      %p43 = scmp.ne.s32.totalorder %s35, %s38
      %p44 = scmp.eq.s32.totalorder %s25, 0
      %p45 = por %p43, %p44
      %p46 = scmp.ne.s32.totalorder %s35, %s38
      %p47 = scmp.eq.s32.totalorder %s30, 1
      %p48 = por %p46, %p47
      %p49 = scmp.ne.s32.totalorder %s38, %s39
      %p50 = scmp.eq.s32.totalorder %s30, 0
      %p51 = por %p49, %p50
      %p52 = scmp.ne.s32.totalorder %s38, %s39
      %p53 = scmp.eq.s32.totalorder %s31, 1
      %p54 = por %p52, %p53
      %p56 = scmp.ne.s32.totalorder %s39, %s55
      %p57 = scmp.eq.s32.totalorder %s31, 0
      %p58 = por %p56, %p57
      %s60 = sadd.s32 %s59, 1
      %p63 = scmp.eq.s32.totalorder %s25, 1
      %p64 = scmp.ne.s32.totalorder %s59, %s61
      %p65 = scmp.eq.s32.totalorder %s25, 0
      %p66 = por %p64, %p65
      %p67 = scmp.ne.s32.totalorder %s59, %s61
      %p68 = scmp.eq.s32.totalorder %s30, 1
      %p69 = por %p67, %p68
      %p70 = scmp.ne.s32.totalorder %s61, %s62
      %p71 = scmp.eq.s32.totalorder %s30, 0
      %p72 = por %p70, %p71
      %p73 = scmp.ne.s32.totalorder %s61, %s62
      %p74 = scmp.eq.s32.totalorder %s31, 1
      %p75 = por %p73, %p74
      %p77 = scmp.ne.s32.totalorder %s62, %s76
      %p78 = scmp.eq.s32.totalorder %s31, 0
      %p79 = por %p77, %p78
      %s81 = sadd.s32 %s80, 1
      %p84 = scmp.eq.s32.totalorder %s25, 1
      %p85 = scmp.ne.s32.totalorder %s80, %s82
      %p86 = scmp.eq.s32.totalorder %s25, 0
      %p87 = por %p85, %p86
      %p88 = scmp.ne.s32.totalorder %s80, %s82
      %p89 = scmp.eq.s32.totalorder %s30, 1
      %p90 = por %p88, %p89
      %p91 = scmp.ne.s32.totalorder %s82, %s83
      %p92 = scmp.eq.s32.totalorder %s30, 0
      %p93 = por %p91, %p92
      %p94 = scmp.ne.s32.totalorder %s82, %s83
      %p95 = scmp.eq.s32.totalorder %s31, 1
      %p96 = por %p94, %p95
      %p98 = scmp.ne.s32.totalorder %s83, %s97
      %p99 = scmp.eq.s32.totalorder %s31, 0
      %p100 = por %p98, %p99
      %s102 = sadd.s32 %s101, 1
      %p105 = scmp.eq.s32.totalorder %s25, 1
      %p106 = scmp.ne.s32.totalorder %s101, %s103
      %p107 = scmp.eq.s32.totalorder %s25, 0
      %p108 = por %p106, %p107
      %p109 = scmp.ne.s32.totalorder %s101, %s103
      %p110 = scmp.eq.s32.totalorder %s30, 1
      %p111 = por %p109, %p110
      %p112 = scmp.ne.s32.totalorder %s103, %s104
      %p113 = scmp.eq.s32.totalorder %s30, 0
      %p114 = por %p112, %p113
      %p115 = scmp.ne.s32.totalorder %s103, %s104
      %p116 = scmp.eq.s32.totalorder %s31, 1
      %p117 = por %p115, %p116
      %p119 = scmp.ne.s32.totalorder %s104, %s118
      %p120 = scmp.eq.s32.totalorder %s31, 0
      %p121 = por %p119, %p120
      %s123 = sadd.s32 %s122, 1
      %p126 = scmp.eq.s32.totalorder %s25, 1
      %p127 = scmp.ne.s32.totalorder %s122, %s124
      %p128 = scmp.eq.s32.totalorder %s25, 0
      %p129 = por %p127, %p128
      %p130 = scmp.ne.s32.totalorder %s122, %s124
      %p131 = scmp.eq.s32.totalorder %s30, 1
      %p132 = por %p130, %p131
      %p133 = scmp.ne.s32.totalorder %s124, %s125
      %p134 = scmp.eq.s32.totalorder %s30, 0
      %p135 = por %p133, %p134
      %p136 = scmp.ne.s32.totalorder %s124, %s125
      %p137 = scmp.eq.s32.totalorder %s31, 1
      %p138 = por %p136, %p137
      %p140 = scmp.ne.s32.totalorder %s125, %s139
      %p141 = scmp.eq.s32.totalorder %s31, 0
      %p142 = por %p140, %p141
      %s144 = sadd.s32 %s143, 1
      %p147 = scmp.eq.s32.totalorder %s25, 1
      %p148 = scmp.ne.s32.totalorder %s143, %s145
      %p149 = scmp.eq.s32.totalorder %s25, 0
      %p150 = por %p148, %p149
      %p151 = scmp.ne.s32.totalorder %s143, %s145
      %p152 = scmp.eq.s32.totalorder %s30, 1
      %p153 = por %p151, %p152
      %p154 = scmp.ne.s32.totalorder %s145, %s146
      %p155 = scmp.eq.s32.totalorder %s30, 0
      %p156 = por %p154, %p155
      %p157 = scmp.ne.s32.totalorder %s145, %s146
      %p158 = scmp.eq.s32.totalorder %s31, 1
      %p159 = por %p157, %p158
      %p161 = scmp.ne.s32.totalorder %s146, %s160
      %p162 = scmp.eq.s32.totalorder %s31, 0
      %p163 = por %p161, %p162
      %s165 = sadd.s32 %s164, 1
      %p168 = scmp.eq.s32.totalorder %s25, 1
      %p169 = scmp.ne.s32.totalorder %s164, %s166
      %p170 = scmp.eq.s32.totalorder %s25, 0
      %p171 = por %p169, %p170
      %p172 = scmp.ne.s32.totalorder %s164, %s166
      %p173 = scmp.eq.s32.totalorder %s30, 1
      %p174 = por %p172, %p173
      %p175 = scmp.ne.s32.totalorder %s166, %s167
      %p176 = scmp.eq.s32.totalorder %s30, 0
      %p177 = por %p175, %p176
      %p178 = scmp.ne.s32.totalorder %s166, %s167
      %p179 = scmp.eq.s32.totalorder %s31, 1
      %p180 = por %p178, %p179
      %p182 = scmp.ne.s32.totalorder %s167, %s181
      %p183 = scmp.eq.s32.totalorder %s31, 0
      %p184 = por %p182, %p183
      %s186 = sadd.s32 %s185, 1
      %p189 = scmp.eq.s32.totalorder %s25, 1
      %p190 = scmp.ne.s32.totalorder %s185, %s187
      %p191 = scmp.eq.s32.totalorder %s25, 0
      %p192 = por %p190, %p191
      %p193 = scmp.ne.s32.totalorder %s185, %s187
      %p194 = scmp.eq.s32.totalorder %s30, 1
      %p195 = por %p193, %p194
      %p196 = scmp.ne.s32.totalorder %s187, %s188
      %p197 = scmp.eq.s32.totalorder %s30, 0
      %p198 = por %p196, %p197
      %p199 = scmp.ne.s32.totalorder %s187, %s188
      %p200 = scmp.eq.s32.totalorder %s31, 1
      %p201 = por %p199, %p200
      %p203 = scmp.ne.s32.totalorder %s188, %s202
      %p204 = scmp.eq.s32.totalorder %s31, 0
      %p205 = por %p203, %p204
      %s207 = sadd.s32 %s206, 1
      %p210 = scmp.eq.s32.totalorder %s25, 1
      %p211 = scmp.ne.s32.totalorder %s206, %s208
      %p212 = scmp.eq.s32.totalorder %s25, 0
      %p213 = por %p211, %p212
      %p214 = scmp.ne.s32.totalorder %s206, %s208
      %p215 = scmp.eq.s32.totalorder %s30, 1
      %p216 = por %p214, %p215
      %p217 = scmp.ne.s32.totalorder %s208, %s209
      %p218 = scmp.eq.s32.totalorder %s30, 0
      %p219 = por %p217, %p218
      %p220 = scmp.ne.s32.totalorder %s208, %s209
      %p221 = scmp.eq.s32.totalorder %s31, 1
      %p222 = por %p220, %p221
      %p224 = scmp.ne.s32.totalorder %s209, %s223
      %p225 = scmp.eq.s32.totalorder %s31, 0
      %p226 = por %p224, %p225
      %s228 = sadd.s32 %s227, 1
      %p231 = scmp.eq.s32.totalorder %s25, 1
      %p232 = scmp.ne.s32.totalorder %s227, %s229
      %p233 = scmp.eq.s32.totalorder %s25, 0
      %p234 = por %p232, %p233
      %p235 = scmp.ne.s32.totalorder %s227, %s229
      %p236 = scmp.eq.s32.totalorder %s30, 1
      %p237 = por %p235, %p236
      %p238 = scmp.ne.s32.totalorder %s229, %s230
      %p239 = scmp.eq.s32.totalorder %s30, 0
      %p240 = por %p238, %p239
      %p241 = scmp.ne.s32.totalorder %s229, %s230
      %p242 = scmp.eq.s32.totalorder %s31, 1
      %p243 = por %p241, %p242
      %p245 = scmp.ne.s32.totalorder %s230, %s244
      %p246 = scmp.eq.s32.totalorder %s31, 0
      %p247 = por %p245, %p246
      %s249 = sadd.s32 %s248, 1
      %p252 = scmp.eq.s32.totalorder %s25, 1
      %p253 = scmp.ne.s32.totalorder %s248, %s250
      %p254 = scmp.eq.s32.totalorder %s25, 0
      %p255 = por %p253, %p254
      %p256 = scmp.ne.s32.totalorder %s248, %s250
      %p257 = scmp.eq.s32.totalorder %s30, 1
      %p258 = por %p256, %p257
      %p259 = scmp.ne.s32.totalorder %s250, %s251
      %p260 = scmp.eq.s32.totalorder %s30, 0
      %p261 = por %p259, %p260
      %p262 = scmp.ne.s32.totalorder %s250, %s251
      %p263 = scmp.eq.s32.totalorder %s31, 1
      %p264 = por %p262, %p263
      %p266 = scmp.ne.s32.totalorder %s251, %s265
      %p267 = scmp.eq.s32.totalorder %s31, 0
      %p268 = por %p266, %p267
      %s269 = ssub.s32 %s25, %s32
      %p270 = scmp.eq.s32.totalorder %s269, 0
      %s272 = sadd.s32 %s271, 1
      %s273 = scalar_select %p270, %s271, %s272
      %p276 = pneg %p270
      %p277 = scmp.eq.s32.totalorder %s25, 1
      %p278 = por %p276, %p277
      %p279 = scmp.ne.s32.totalorder %s271, %s274
      %p280 = scmp.eq.s32.totalorder %s25, 0
      %p281 = por %p279, %p280
      %p282 = scmp.ne.s32.totalorder %s271, %s274
      %p283 = scmp.eq.s32.totalorder %s30, 1
      %p284 = por %p282, %p283
      %p285 = scmp.ne.s32.totalorder %s274, %s275
      %p286 = scmp.eq.s32.totalorder %s30, 0
      %p287 = por %p285, %p286
      %p288 = scmp.ne.s32.totalorder %s274, %s275
      %p289 = scmp.eq.s32.totalorder %s31, 1
      %p290 = por %p288, %p289
      %p292 = scmp.ne.s32.totalorder %s275, %s291
      %p293 = scmp.eq.s32.totalorder %s31, 0
      %p294 = por %p292, %p293
      %p295 = scmp.le.s32.totalorder 1, %s25
      %p296 = scmp.lt.s32.totalorder %s25, 3
      %p297 = pnand %p295, %p296
      %p298 = pneg %p297
      // Predicated region
      $region9: #{tpu_custom_call.1} parent=5 // pred_check
        _
      $region10: #{tpu_custom_call.1} parent=5 // pred_check_branch
        %300 = sbr.rel (%p297) target = $region12
      $region11: #{tpu_custom_call.1} parent=5 // pred_region
        %s301 = ssub.s32 %s25, 1
        // Predicated region
        $region13: #{tpu_custom_call.1} parent=11 // pred_check
          %p302 = pneg %p72
        $region14: #{tpu_custom_call.1} parent=11 // pred_check_branch
          %304 = sbr.rel (%p302) target = $region16
        $region15: #{tpu_custom_call.1} parent=11 // pred_region
          _
        $region16: #{tpu_custom_call.1} parent=11 // pred_fallthru
          _
        // Predicated region
        $region17: #{tpu_custom_call.1} parent=11 // pred_check
          %p305 = pneg %p93
        $region18: #{tpu_custom_call.1} parent=11 // pred_check_branch
          %307 = sbr.rel (%p305) target = $region20
        $region19: #{tpu_custom_call.1} parent=11 // pred_region
          _
        $region20: #{tpu_custom_call.1} parent=11 // pred_fallthru
          _
        // Predicated region
        $region21: #{tpu_custom_call.1} parent=11 // pred_check
          %p308 = pneg %p114
        $region22: #{tpu_custom_call.1} parent=11 // pred_check_branch
          %310 = sbr.rel (%p308) target = $region24
        $region23: #{tpu_custom_call.1} parent=11 // pred_region
          %s312 = ssub.s32 512, 512
          %313 = vsyncadd [#allocation6], %s312
          %s314 = sshll.u32 [#allocation5], 4
          %s315 = int_to_ptr.vmem [resolvable:$true] %s314
          %320 = dma.hbm_to_vmem [thread:$0]  %s3, 512, %s315, [#allocation6], 128, 128, 8
        $region24: #{tpu_custom_call.1} parent=11 // pred_fallthru
          _
        // Predicated region
        $region25: #{tpu_custom_call.1} parent=11 // pred_check
          %p321 = pneg %p135
        $region26: #{tpu_custom_call.1} parent=11 // pred_check_branch
          %323 = sbr.rel (%p321) target = $region28
        $region27: #{tpu_custom_call.1} parent=11 // pred_region
          _
        $region28: #{tpu_custom_call.1} parent=11 // pred_fallthru
          _
        // Predicated region
        $region29: #{tpu_custom_call.1} parent=11 // pred_check
          %p324 = pneg %p156
        $region30: #{tpu_custom_call.1} parent=11 // pred_check_branch
          %326 = sbr.rel (%p324) target = $region32
        $region31: #{tpu_custom_call.1} parent=11 // pred_region
          %s328 = ssub.s32 512, 512
          %329 = vsyncadd [#allocation6], %s328
          %s330 = sshll.u32 [#allocation7], 4
          %s331 = int_to_ptr.vmem [resolvable:$true] %s330
          %336 = dma.hbm_to_vmem [thread:$0]  %s5, 512, %s331, [#allocation6], 128, 128, 8
        $region32: #{tpu_custom_call.1} parent=11 // pred_fallthru
          _
        // Predicated region
        $region33: #{tpu_custom_call.1} parent=11 // pred_check
          %p337 = pneg %p177
        $region34: #{tpu_custom_call.1} parent=11 // pred_check_branch
          %339 = sbr.rel (%p337) target = $region36
        $region35: #{tpu_custom_call.1} parent=11 // pred_region
          _
        $region36: #{tpu_custom_call.1} parent=11 // pred_fallthru
          _
        // Predicated region
        $region37: #{tpu_custom_call.1} parent=11 // pred_check
          %p340 = pneg %p198
        $region38: #{tpu_custom_call.1} parent=11 // pred_check_branch
          %342 = sbr.rel (%p340) target = $region40
        $region39: #{tpu_custom_call.1} parent=11 // pred_region
          %s344 = ssub.s32 512, 512
          %345 = vsyncadd [#allocation9], %s344
          %s346 = sshll.u32 [#allocation8], 4
          %s347 = int_to_ptr.vmem [resolvable:$true] %s346
          %352 = dma.hbm_to_vmem [thread:$0]  %s7, 512, %s347, [#allocation9], 128, 128, 8
        $region40: #{tpu_custom_call.1} parent=11 // pred_fallthru
          _
        // Predicated region
        $region41: #{tpu_custom_call.1} parent=11 // pred_check
          %p353 = pneg %p219
        $region42: #{tpu_custom_call.1} parent=11 // pred_check_branch
          %355 = sbr.rel (%p353) target = $region44
        $region43: #{tpu_custom_call.1} parent=11 // pred_region
          _
        $region44: #{tpu_custom_call.1} parent=11 // pred_fallthru
          _
        // Predicated region
        $region45: #{tpu_custom_call.1} parent=11 // pred_check
          %p356 = pneg %p240
        $region46: #{tpu_custom_call.1} parent=11 // pred_check_branch
          %358 = sbr.rel (%p356) target = $region48
        $region47: #{tpu_custom_call.1} parent=11 // pred_region
          %s360 = ssub.s32 512, 512
          %361 = vsyncadd [#allocation9], %s360
          %s362 = sshll.u32 [#allocation10], 4
          %s363 = int_to_ptr.vmem [resolvable:$true] %s362
          %368 = dma.hbm_to_vmem [thread:$0]  %s9, 512, %s363, [#allocation9], 128, 128, 8
        $region48: #{tpu_custom_call.1} parent=11 // pred_fallthru
          _
        // Predicated region
        $region49: #{tpu_custom_call.1} parent=11 // pred_check
          %p369 = pneg %p261
        $region50: #{tpu_custom_call.1} parent=11 // pred_check_branch
          %371 = sbr.rel (%p369) target = $region52
        $region51: #{tpu_custom_call.1} parent=11 // pred_region
          _
        $region52: #{tpu_custom_call.1} parent=11 // pred_fallthru
          _
      $region12: #{tpu_custom_call.1} parent=5 // pred_fallthru
        _
      %p372 = scmp.lt.s32.totalorder %s25, 2
      // Predicated region
      $region53: #{tpu_custom_call.1} parent=5 // pred_check
        %p373 = pneg %p372
      $region54: #{tpu_custom_call.1} parent=5 // pred_check_branch
        %375 = sbr.rel (%p373) target = $region56
      $region55: #{tpu_custom_call.1} parent=5 // pred_region
        // Predicated region
        $region57: #{tpu_custom_call.1} parent=55 // pred_check
          %p376 = pneg %p45
        $region58: #{tpu_custom_call.1} parent=55 // pred_check_branch
          %378 = sbr.rel (%p376) target = $region60
        $region59: #{tpu_custom_call.1} parent=55 // pred_region
          %s379 = sand.u32 %s35, 1
          %s380 = scalar_lea.sflag [#allocation3], %s379
          %s381 = sand.u32 %s35, 1
          %s382 = smul.addr %s381, 8
          %s383 = scalar_lea.vmem [#allocation2], %s382
          %s385 = ssub.s32 128, 128
          %386 = vsyncadd %s380, %s385
          %s387 = smul.addr %s25, 128
          %s388 = scalar_lea.hbm %s0, %s387
          %s390 = sshll.u32 %s383, 4
          %s391 = int_to_ptr.vmem [resolvable:$true] %s390
          %393 = dma.hbm_to_vmem [thread:$0]  %s388, 128, %s391, %s380
        $region60: #{tpu_custom_call.1} parent=55 // pred_fallthru
          _
      $region56: #{tpu_custom_call.1} parent=5 // pred_fallthru
        _
      %p394 = scmp.le.s32.totalorder 1, %s25
      %p395 = scmp.lt.s32.totalorder %s25, 3
      %p396 = pnand %p394, %p395
      %p397 = pneg %p396
      // Predicated region
      $region61: #{tpu_custom_call.1} parent=5 // pred_check
        _
      $region62: #{tpu_custom_call.1} parent=5 // pred_check_branch
        %399 = sbr.rel (%p396) target = $region64
      $region63: #{tpu_custom_call.1} parent=5 // pred_region
        %s400 = ssub.s32 %s25, 1
        %s401 = sand.u32 %s38, 1
        %s402 = scalar_lea.sflag [#allocation3], %s401
        %s403 = sand.u32 %s38, 1
        %s404 = smul.addr %s403, 8
        %s405 = scalar_lea.vmem [#allocation2], %s404
        // Predicated region
        $region65: #{tpu_custom_call.1} parent=63 // pred_check
          %p406 = pneg %p51
        $region66: #{tpu_custom_call.1} parent=63 // pred_check_branch
          %408 = sbr.rel (%p406) target = $region68
        $region67: #{tpu_custom_call.1} parent=63 // pred_region
          %409 = dma.done %s402, 128
        $region68: #{tpu_custom_call.1} parent=63 // pred_fallthru
          _
        // Predicated region
        $region69: #{tpu_custom_call.1} parent=63 // pred_check
          %p410 = pneg %p114
        $region70: #{tpu_custom_call.1} parent=63 // pred_check_branch
          %412 = sbr.rel (%p410) target = $region72
        $region71: #{tpu_custom_call.1} parent=63 // pred_region
          %413 = dma.done [#allocation6], 512
        $region72: #{tpu_custom_call.1} parent=63 // pred_fallthru
          _
        // Predicated region
        $region73: #{tpu_custom_call.1} parent=63 // pred_check
          %p414 = pneg %p156
        $region74: #{tpu_custom_call.1} parent=63 // pred_check_branch
          %416 = sbr.rel (%p414) target = $region76
        $region75: #{tpu_custom_call.1} parent=63 // pred_region
          %417 = dma.done [#allocation6], 512
        $region76: #{tpu_custom_call.1} parent=63 // pred_fallthru
          _
        // Predicated region
        $region77: #{tpu_custom_call.1} parent=63 // pred_check
          %p418 = pneg %p198
        $region78: #{tpu_custom_call.1} parent=63 // pred_check_branch
          %420 = sbr.rel (%p418) target = $region80
        $region79: #{tpu_custom_call.1} parent=63 // pred_region
          %421 = dma.done [#allocation9], 512
        $region80: #{tpu_custom_call.1} parent=63 // pred_fallthru
          _
        // Predicated region
        $region81: #{tpu_custom_call.1} parent=63 // pred_check
          %p422 = pneg %p240
        $region82: #{tpu_custom_call.1} parent=63 // pred_check_branch
          %424 = sbr.rel (%p422) target = $region84
        $region83: #{tpu_custom_call.1} parent=63 // pred_region
          %425 = dma.done [#allocation9], 512
        $region84: #{tpu_custom_call.1} parent=63 // pred_fallthru
          _
        %s426 = sand.u32 %s38, 1
        %s427 = scalar_lea.sflag [#allocation3], %s426
        %s428 = sand.u32 %s38, 1
        %s429 = smul.addr %s428, 8
        %s430 = scalar_lea.vmem [#allocation2], %s429
        %p431 = pneg %p51
        %p432 = pneg %p48
        %p433 = pneg %p72
        %p434 = pneg %p69
        %p435 = pneg %p93
        %p436 = pneg %p90
        %p437 = pneg %p114
        %p438 = pneg %p111
        %p439 = pneg %p135
        %p440 = pneg %p132
        %p441 = pneg %p156
        %p442 = pneg %p153
        %p443 = pneg %p177
        %p444 = pneg %p174
        %p445 = pneg %p198
        %p446 = pneg %p195
        %p447 = pneg %p219
        %p448 = pneg %p216
        %p449 = pneg %p240
        %p450 = pneg %p237
        %p451 = pneg %p261
        %p452 = pneg %p258
        %p453 = pneg %p287
        %p454 = pneg %p284
        %s455 = sand.u32 %s274, 1
        %s456 = scalar_lea.sflag [#allocation4], %s455
        %s457 = sand.u32 %s274, 1
        %s458 = smul.addr %s457, 8
        %s459 = scalar_lea.vmem [#allocation11], %s458
        %v460 = vld [vmem:[%s405] sm:$0xff]
        %v461 = vld [vmem:[%s1] sm:$0x1]
        %v462 = vld [vmem:[%s2] sm:$0x1]
        %vm463 = vcmask 261120
        %v464 = vsel %vm463, %v460, 0.0
        %465 = vadd.xlane.f32.xlu0 %v464
        %v466 = vpop.xlane.xlu0 %465
        %v467 = vrcp.pop 32.0
        %v468 = vmul.f32 %v466, %v467
        %v469 = vsub.f32 %v460, %v468
        %v470 = vmul.f32 %v469, %v469
        %v471 = vsel %vm463, %v470, 0.0
        %472 = vadd.xlane.f32.xlu0 %v471
        %v473 = vpop.xlane.xlu0 %472
        %v474 = vmul.f32 %v473, %v467
        %v475 = vadd.f32 %v474, 1e-05
        %v476 = vrsqrt.pop %v475
        %v477 = vmul.f32 %v469, %v476
        %v479 = vlaneseq
        %v480 = vshrl.u32 %v479, 7
        %v481 = vsub.s32 0, %v480
        %v482 = vrot.slane %v461, %v481
        %v484 = vmul.f32 %v477, %v482
        %v486 = vlaneseq
        %v487 = vshrl.u32 %v486, 7
        %v488 = vsub.s32 0, %v487
        %v489 = vrot.slane %v462, %v488
        %v491 = vadd.f32 %v484, %v489
        %v492 = vld [vmem:[#allocation5] sm:$0xff]
        %v493 = vld [vmem:[#allocation5 + $0x8] sm:$0xff]
        %v494 = vld [vmem:[#allocation5 + $0x10] sm:$0xff]
        %v495 = vld [vmem:[#allocation5 + $0x18] sm:$0xff]
        %v496 = vld [vmem:[%s4] sm:$0x1]
        %v498 = vlaneseq
        %v499 = vshrl.u32 %v498, 7
        %v500 = vsub.s32 0, %v499
        %v501 = vrot.slane %v496, %v500
        %v504 = vsel %vm463, %v491, 0
        %506 = vmatprep.subr.mxu0 0.0
        %507 = vmatpush1.msra.mxu0 0.0
        %508 = vmatprep.subr.mxu0 0.0
        %509 = vmatpush1.msra.mxu0 0.0
        %510 = vmatprep.subr.mxu0 0.0
        %511 = vmatpush1.msra.mxu0 0.0
        %512 = vmatprep.subr.mxu0 0.0
        %513 = vmatpush1.msra.mxu0 0.0
        %514 = vmatprep.subr.mxu0 0.0
        %515 = vmatpush1.msra.mxu0 0.0
        %516 = vmatprep.subr.mxu0 0.0
        %517 = vmatpush1.msra.mxu0 0.0
        %518 = vmatprep.subr.mxu0 0.0
        %519 = vmatpush1.msra.mxu0 0.0
        %520 = vmatprep.subr.mxu0 0.0
        %521 = vmatpush1.msra.mxu0 0.0
        %522 = vmatprep.subr.mxu0 0.0
        %523 = vmatpush1.msra.mxu0 0.0
        %524 = vmatprep.subr.mxu0 0.0
        %525 = vmatpush1.msra.mxu0 0.0
        %526 = vmatprep.subr.mxu0 0.0
        %527 = vmatpush1.msra.mxu0 0.0
        %528 = vmatprep.subr.mxu0 0.0
        %529 = vmatpush1.msra.mxu0 0.0
        %530 = vmatprep.subr.mxu0 0.0
        %531 = vmatpush1.msra.mxu0 %v495
        %532 = vmatprep.subr.mxu0 0.0
        %533 = vmatpush1.msra.mxu0 %v494
        %534 = vmatprep.subr.mxu0 0.0
        %535 = vmatpush1.msra.mxu0 %v493
        %536 = vmatprep.subr.mxu0 0.0
        %537 = vmatpush1.msra.mxu0 %v492
        %538 = vmatprep.subr.mxu0 0.0
        %539 = vmatpush2.msra.mxu0 0.0
        %540 = vmatprep.subr.mxu0 0.0
        %541 = vmatpush2.msra.mxu0 0.0
        %542 = vmatprep.subr.mxu0 0.0
        %543 = vmatpush2.msra.mxu0 0.0
        %544 = vmatprep.subr.mxu0 0.0
        %545 = vmatpush2.msra.mxu0 0.0
        %546 = vmatprep.subr.mxu0 0.0
        %547 = vmatpush2.msra.mxu0 0.0
        %548 = vmatprep.subr.mxu0 0.0
        %549 = vmatpush2.msra.mxu0 0.0
        %550 = vmatprep.subr.mxu0 0.0
        %551 = vmatpush2.msra.mxu0 0.0
        %552 = vmatprep.subr.mxu0 0.0
        %553 = vmatpush2.msra.mxu0 0.0
        %554 = vmatprep.subr.mxu0 0.0
        %555 = vmatpush2.msra.mxu0 0.0
        %556 = vmatprep.subr.mxu0 0.0
        %557 = vmatpush2.msra.mxu0 0.0
        %558 = vmatprep.subr.mxu0 0.0
        %559 = vmatpush2.msra.mxu0 0.0
        %560 = vmatprep.subr.mxu0 0.0
        %561 = vmatpush2.msra.mxu0 0.0
        %562 = vmatprep.subr.mxu0 0.0
        %563 = vmatpush2.msra.mxu0 0.0
        %564 = vmatprep.subr.mxu0 0.0
        %565 = vmatpush2.msra.mxu0 0.0
        %566 = vmatprep.subr.mxu0 0.0
        %567 = vmatpush2.msra.mxu0 0.0
        %568 = vmatprep.subr.mxu0 0.0
        %569 = vmatpush2.msra.mxu0 0.0
        %570 = vmatprep.mubr.f32.mxu0 0.0
        %571 = vmatmul.mubr.f32.gmra.mxu0 %v504
        %v572 = vpop.f32.mrf.mxu0
        %v573 = vadd.f32 %v501, %v572
        %v574 = vpop.f32.mrf.mxu0
        %575 = vdwg.mxu0
        %v576 = vld [vmem:[#allocation7] sm:$0xff]
        %v577 = vld [vmem:[#allocation7 + $0x8] sm:$0xff]
        %v578 = vld [vmem:[#allocation7 + $0x10] sm:$0xff]
        %v579 = vld [vmem:[#allocation7 + $0x18] sm:$0xff]
        %v580 = vld [vmem:[%s6] sm:$0x1]
        %v582 = vlaneseq
        %v583 = vshrl.u32 %v582, 7
        %v584 = vsub.s32 0, %v583
        %v585 = vrot.slane %v580, %v584
        %587 = vmatprep.subr.mxu0 0.0
        %588 = vmatpush1.msra.mxu0 0.0
        %589 = vmatprep.subr.mxu0 0.0
        %590 = vmatpush1.msra.mxu0 0.0
        %591 = vmatprep.subr.mxu0 0.0
        %592 = vmatpush1.msra.mxu0 0.0
        %593 = vmatprep.subr.mxu0 0.0
        %594 = vmatpush1.msra.mxu0 0.0
        %595 = vmatprep.subr.mxu0 0.0
        %596 = vmatpush1.msra.mxu0 0.0
        %597 = vmatprep.subr.mxu0 0.0
        %598 = vmatpush1.msra.mxu0 0.0
        %599 = vmatprep.subr.mxu0 0.0
        %600 = vmatpush1.msra.mxu0 0.0
        %601 = vmatprep.subr.mxu0 0.0
        %602 = vmatpush1.msra.mxu0 0.0
        %603 = vmatprep.subr.mxu0 0.0
        %604 = vmatpush1.msra.mxu0 0.0
        %605 = vmatprep.subr.mxu0 0.0
        %606 = vmatpush1.msra.mxu0 0.0
        %607 = vmatprep.subr.mxu0 0.0
        %608 = vmatpush1.msra.mxu0 0.0
        %609 = vmatprep.subr.mxu0 0.0
        %610 = vmatpush1.msra.mxu0 0.0
        %611 = vmatprep.subr.mxu0 0.0
        %612 = vmatpush1.msra.mxu0 %v579
        %613 = vmatprep.subr.mxu0 0.0
        %614 = vmatpush1.msra.mxu0 %v578
        %615 = vmatprep.subr.mxu0 0.0
        %616 = vmatpush1.msra.mxu0 %v577
        %617 = vmatprep.subr.mxu0 0.0
        %618 = vmatpush1.msra.mxu0 %v576
        %619 = vmatprep.subr.mxu0 0.0
        %620 = vmatpush2.msra.mxu0 0.0
        %621 = vmatprep.subr.mxu0 0.0
        %622 = vmatpush2.msra.mxu0 0.0
        %623 = vmatprep.subr.mxu0 0.0
        %624 = vmatpush2.msra.mxu0 0.0
        %625 = vmatprep.subr.mxu0 0.0
        %626 = vmatpush2.msra.mxu0 0.0
        %627 = vmatprep.subr.mxu0 0.0
        %628 = vmatpush2.msra.mxu0 0.0
        %629 = vmatprep.subr.mxu0 0.0
        %630 = vmatpush2.msra.mxu0 0.0
        %631 = vmatprep.subr.mxu0 0.0
        %632 = vmatpush2.msra.mxu0 0.0
        %633 = vmatprep.subr.mxu0 0.0
        %634 = vmatpush2.msra.mxu0 0.0
        %635 = vmatprep.subr.mxu0 0.0
        %636 = vmatpush2.msra.mxu0 0.0
        %637 = vmatprep.subr.mxu0 0.0
        %638 = vmatpush2.msra.mxu0 0.0
        %639 = vmatprep.subr.mxu0 0.0
        %640 = vmatpush2.msra.mxu0 0.0
        %641 = vmatprep.subr.mxu0 0.0
        %642 = vmatpush2.msra.mxu0 0.0
        %643 = vmatprep.subr.mxu0 0.0
        %644 = vmatpush2.msra.mxu0 0.0
        %645 = vmatprep.subr.mxu0 0.0
        %646 = vmatpush2.msra.mxu0 0.0
        %647 = vmatprep.subr.mxu0 0.0
        %648 = vmatpush2.msra.mxu0 0.0
        %649 = vmatprep.subr.mxu0 0.0
        %650 = vmatpush2.msra.mxu0 0.0
        %651 = vmatprep.mubr.f32.mxu0 0.0
        %652 = vmatmul.mubr.f32.gmra.mxu0 %v504
        %v653 = vpop.f32.mrf.mxu0
        %v654 = vadd.f32 %v585, %v653
        %v655 = vpop.f32.mrf.mxu0
        %656 = vdwg.mxu0
        %v657 = vld [vmem:[#allocation8] sm:$0xff]
        %v658 = vld [vmem:[#allocation8 + $0x8] sm:$0xff]
        %v659 = vld [vmem:[#allocation8 + $0x10] sm:$0xff]
        %v660 = vld [vmem:[#allocation8 + $0x18] sm:$0xff]
        %v661 = vld [vmem:[%s8] sm:$0x1]
        %v663 = vlaneseq
        %v664 = vshrl.u32 %v663, 7
        %v665 = vsub.s32 0, %v664
        %v666 = vrot.slane %v661, %v665
        %668 = vmatprep.subr.mxu0 0.0
        %669 = vmatpush1.msra.mxu0 0.0
        %670 = vmatprep.subr.mxu0 0.0
        %671 = vmatpush1.msra.mxu0 0.0
        %672 = vmatprep.subr.mxu0 0.0
        %673 = vmatpush1.msra.mxu0 0.0
        %674 = vmatprep.subr.mxu0 0.0
        %675 = vmatpush1.msra.mxu0 0.0
        %676 = vmatprep.subr.mxu0 0.0
        %677 = vmatpush1.msra.mxu0 0.0
        %678 = vmatprep.subr.mxu0 0.0
        %679 = vmatpush1.msra.mxu0 0.0
        %680 = vmatprep.subr.mxu0 0.0
        %681 = vmatpush1.msra.mxu0 0.0
        %682 = vmatprep.subr.mxu0 0.0
        %683 = vmatpush1.msra.mxu0 0.0
        %684 = vmatprep.subr.mxu0 0.0
        %685 = vmatpush1.msra.mxu0 0.0
        %686 = vmatprep.subr.mxu0 0.0
        %687 = vmatpush1.msra.mxu0 0.0
        %688 = vmatprep.subr.mxu0 0.0
        %689 = vmatpush1.msra.mxu0 0.0
        %690 = vmatprep.subr.mxu0 0.0
        %691 = vmatpush1.msra.mxu0 0.0
        %692 = vmatprep.subr.mxu0 0.0
        %693 = vmatpush1.msra.mxu0 %v660
        %694 = vmatprep.subr.mxu0 0.0
        %695 = vmatpush1.msra.mxu0 %v659
        %696 = vmatprep.subr.mxu0 0.0
        %697 = vmatpush1.msra.mxu0 %v658
        %698 = vmatprep.subr.mxu0 0.0
        %699 = vmatpush1.msra.mxu0 %v657
        %700 = vmatprep.subr.mxu0 0.0
        %701 = vmatpush2.msra.mxu0 0.0
        %702 = vmatprep.subr.mxu0 0.0
        %703 = vmatpush2.msra.mxu0 0.0
        %704 = vmatprep.subr.mxu0 0.0
        %705 = vmatpush2.msra.mxu0 0.0
        %706 = vmatprep.subr.mxu0 0.0
        %707 = vmatpush2.msra.mxu0 0.0
        %708 = vmatprep.subr.mxu0 0.0
        %709 = vmatpush2.msra.mxu0 0.0
        %710 = vmatprep.subr.mxu0 0.0
        %711 = vmatpush2.msra.mxu0 0.0
        %712 = vmatprep.subr.mxu0 0.0
        %713 = vmatpush2.msra.mxu0 0.0
        %714 = vmatprep.subr.mxu0 0.0
        %715 = vmatpush2.msra.mxu0 0.0
        %716 = vmatprep.subr.mxu0 0.0
        %717 = vmatpush2.msra.mxu0 0.0
        %718 = vmatprep.subr.mxu0 0.0
        %719 = vmatpush2.msra.mxu0 0.0
        %720 = vmatprep.subr.mxu0 0.0
        %721 = vmatpush2.msra.mxu0 0.0
        %722 = vmatprep.subr.mxu0 0.0
        %723 = vmatpush2.msra.mxu0 0.0
        %724 = vmatprep.subr.mxu0 0.0
        %725 = vmatpush2.msra.mxu0 0.0
        %726 = vmatprep.subr.mxu0 0.0
        %727 = vmatpush2.msra.mxu0 0.0
        %728 = vmatprep.subr.mxu0 0.0
        %729 = vmatpush2.msra.mxu0 0.0
        %730 = vmatprep.subr.mxu0 0.0
        %731 = vmatpush2.msra.mxu0 0.0
        %732 = vmatprep.mubr.f32.mxu0 0.0
        %733 = vmatmul.mubr.f32.gmra.mxu0 %v504
        %v734 = vpop.f32.mrf.mxu0
        %v735 = vadd.f32 %v666, %v734
        %v736 = vpop.f32.mrf.mxu0
        %737 = vdwg.mxu0
        %vm738 = vcmask 64512
        %v740 = vsel %vm738, %v573, 0
        %v743 = vsel %vm738, %v654, 0
        %745 = vmatprep.subr.mxu0 0.0
        %746 = vmatpush1.xpose.msra.mxu0 0.0
        %747 = vmatprep.subr.mxu0 0.0
        %748 = vmatpush1.xpose.msra.mxu0 0.0
        %749 = vmatprep.subr.mxu0 0.0
        %750 = vmatpush1.xpose.msra.mxu0 0.0
        %751 = vmatprep.subr.mxu0 0.0
        %752 = vmatpush1.xpose.msra.mxu0 0.0
        %753 = vmatprep.subr.mxu0 0.0
        %754 = vmatpush1.xpose.msra.mxu0 0.0
        %755 = vmatprep.subr.mxu0 0.0
        %756 = vmatpush1.xpose.msra.mxu0 0.0
        %757 = vmatprep.subr.mxu0 0.0
        %758 = vmatpush1.xpose.msra.mxu0 0.0
        %759 = vmatprep.subr.mxu0 0.0
        %760 = vmatpush1.xpose.msra.mxu0 0.0
        %761 = vmatprep.subr.mxu0 0.0
        %762 = vmatpush1.xpose.msra.mxu0 0.0
        %763 = vmatprep.subr.mxu0 0.0
        %764 = vmatpush1.xpose.msra.mxu0 0.0
        %765 = vmatprep.subr.mxu0 0.0
        %766 = vmatpush1.xpose.msra.mxu0 0.0
        %767 = vmatprep.subr.mxu0 0.0
        %768 = vmatpush1.xpose.msra.mxu0 0.0
        %769 = vmatprep.subr.mxu0 0.0
        %770 = vmatpush1.xpose.msra.mxu0 0.0
        %771 = vmatprep.subr.mxu0 0.0
        %772 = vmatpush1.xpose.msra.mxu0 0.0
        %773 = vmatprep.subr.mxu0 0.0
        %774 = vmatpush1.xpose.msra.mxu0 0.0
        %775 = vmatprep.subr.mxu0 0.0
        %776 = vmatpush1.xpose.msra.mxu0 %v743
        %777 = vmatprep.subr.mxu0 0.0
        %778 = vmatpush2.xpose.msra.mxu0 0.0
        %779 = vmatprep.subr.mxu0 0.0
        %780 = vmatpush2.xpose.msra.mxu0 0.0
        %781 = vmatprep.subr.mxu0 0.0
        %782 = vmatpush2.xpose.msra.mxu0 0.0
        %783 = vmatprep.subr.mxu0 0.0
        %784 = vmatpush2.xpose.msra.mxu0 0.0
        %785 = vmatprep.subr.mxu0 0.0
        %786 = vmatpush2.xpose.msra.mxu0 0.0
        %787 = vmatprep.subr.mxu0 0.0
        %788 = vmatpush2.xpose.msra.mxu0 0.0
        %789 = vmatprep.subr.mxu0 0.0
        %790 = vmatpush2.xpose.msra.mxu0 0.0
        %791 = vmatprep.subr.mxu0 0.0
        %792 = vmatpush2.xpose.msra.mxu0 0.0
        %793 = vmatprep.subr.mxu0 0.0
        %794 = vmatpush2.xpose.msra.mxu0 0.0
        %795 = vmatprep.subr.mxu0 0.0
        %796 = vmatpush2.xpose.msra.mxu0 0.0
        %797 = vmatprep.subr.mxu0 0.0
        %798 = vmatpush2.xpose.msra.mxu0 0.0
        %799 = vmatprep.subr.mxu0 0.0
        %800 = vmatpush2.xpose.msra.mxu0 0.0
        %801 = vmatprep.subr.mxu0 0.0
        %802 = vmatpush2.xpose.msra.mxu0 0.0
        %803 = vmatprep.subr.mxu0 0.0
        %804 = vmatpush2.xpose.msra.mxu0 0.0
        %805 = vmatprep.subr.mxu0 0.0
        %806 = vmatpush2.xpose.msra.mxu0 0.0
        %807 = vmatprep.subr.mxu0 0.0
        %808 = vmatpush2.xpose.msra.mxu0 0.0
        %809 = vmatprep.mubr.f32.mxu0 0.0
        %810 = vmatmul.mubr.f32.gmra.mxu0 %v740
        %v811 = vpop.f32.mrf.mxu0
        %v812 = vadd.f32 0.0, %v811
        %v813 = vpop.f32.mrf.mxu0
        %814 = vdwg.mxu0
        %v815 = vmul.f32 %v812, 0.35355338
        %v816 = vsel %vm738, %v815, -inf
        %817 = vmax.xlane.f32.xlu0 %v816
        %v818 = vpop.xlane.xlu0 %817
        %v819 = vsub.f32 %v815, %v818
        %v820 = vmul.f32 %v819, 1.442695
        %v821 = vpow.pop %v820
        %v822 = vsel %vm738, %v821, 0.0
        %823 = vadd.xlane.f32.xlu0 %v822
        %v824 = vpop.xlane.xlu0 %823
        %v825 = vrcp.pop %v824
        %v826 = vmul.f32 %v824, %v825
        %v827 = vsub.f32 2.0, %v826
        %v828 = vmul.f32 %v825, %v827
        %v829 = vmul.f32 %v821, %v828
        %v831 = vsel %vm738, %v829, 0
        %833 = vmatprep.subr.mxu0 0.0
        %834 = vmatpush1.msra.mxu0 0.0
        %835 = vmatprep.subr.mxu0 0.0
        %836 = vmatpush1.msra.mxu0 0.0
        %837 = vmatprep.subr.mxu0 0.0
        %838 = vmatpush1.msra.mxu0 0.0
        %839 = vmatprep.subr.mxu0 0.0
        %840 = vmatpush1.msra.mxu0 0.0
        %841 = vmatprep.subr.mxu0 0.0
        %842 = vmatpush1.msra.mxu0 0.0
        %843 = vmatprep.subr.mxu0 0.0
        %844 = vmatpush1.msra.mxu0 0.0
        %845 = vmatprep.subr.mxu0 0.0
        %846 = vmatpush1.msra.mxu0 0.0
        %847 = vmatprep.subr.mxu0 0.0
        %848 = vmatpush1.msra.mxu0 0.0
        %849 = vmatprep.subr.mxu0 0.0
        %850 = vmatpush1.msra.mxu0 0.0
        %851 = vmatprep.subr.mxu0 0.0
        %852 = vmatpush1.msra.mxu0 0.0
        %853 = vmatprep.subr.mxu0 0.0
        %854 = vmatpush1.msra.mxu0 0.0
        %855 = vmatprep.subr.mxu0 0.0
        %856 = vmatpush1.msra.mxu0 0.0
        %857 = vmatprep.subr.mxu0 0.0
        %858 = vmatpush1.msra.mxu0 0.0
        %859 = vmatprep.subr.mxu0 0.0
        %860 = vmatpush1.msra.mxu0 0.0
        %861 = vmatprep.subr.mxu0 0.0
        %862 = vmatpush1.msra.mxu0 0.0
        %863 = vmatprep.subr.mxu0 0.0
        %864 = vmatpush1.msra.mxu0 %v735
        %865 = vmatprep.subr.mxu0 0.0
        %866 = vmatpush2.msra.mxu0 0.0
        %867 = vmatprep.subr.mxu0 0.0
        %868 = vmatpush2.msra.mxu0 0.0
        %869 = vmatprep.subr.mxu0 0.0
        %870 = vmatpush2.msra.mxu0 0.0
        %871 = vmatprep.subr.mxu0 0.0
        %872 = vmatpush2.msra.mxu0 0.0
        %873 = vmatprep.subr.mxu0 0.0
        %874 = vmatpush2.msra.mxu0 0.0
        %875 = vmatprep.subr.mxu0 0.0
        %876 = vmatpush2.msra.mxu0 0.0
        %877 = vmatprep.subr.mxu0 0.0
        %878 = vmatpush2.msra.mxu0 0.0
        %879 = vmatprep.subr.mxu0 0.0
        %880 = vmatpush2.msra.mxu0 0.0
        %881 = vmatprep.subr.mxu0 0.0
        %882 = vmatpush2.msra.mxu0 0.0
        %883 = vmatprep.subr.mxu0 0.0
        %884 = vmatpush2.msra.mxu0 0.0
        %885 = vmatprep.subr.mxu0 0.0
        %886 = vmatpush2.msra.mxu0 0.0
        %887 = vmatprep.subr.mxu0 0.0
        %888 = vmatpush2.msra.mxu0 0.0
        %889 = vmatprep.subr.mxu0 0.0
        %890 = vmatpush2.msra.mxu0 0.0
        %891 = vmatprep.subr.mxu0 0.0
        %892 = vmatpush2.msra.mxu0 0.0
        %893 = vmatprep.subr.mxu0 0.0
        %894 = vmatpush2.msra.mxu0 0.0
        %895 = vmatprep.subr.mxu0 0.0
        %896 = vmatpush2.msra.mxu0 0.0
        %897 = vmatprep.mubr.f32.mxu0 0.0
        %898 = vmatmul.mubr.f32.gmra.mxu0 %v831
        %v899 = vpop.f32.mrf.mxu0
        %v900 = vadd.f32 0.0, %v899
        %v901 = vpop.f32.mrf.mxu0
        %902 = vdwg.mxu0
        %903 = vrot.lane.b32.xlu0 %v573, 120
        %v904 = vpop.permute.xlu0 %903
        %905 = vrot.lane.b32.xlu0 %v654, 120
        %v906 = vpop.permute.xlu0 %905
        %v907 = vsel %vm738, %v904, 0
        %v909 = vsel %vm738, %v906, 0
        %911 = vmatprep.subr.mxu0 0.0
        %912 = vmatpush1.xpose.msra.mxu0 0.0
        %913 = vmatprep.subr.mxu0 0.0
        %914 = vmatpush1.xpose.msra.mxu0 0.0
        %915 = vmatprep.subr.mxu0 0.0
        %916 = vmatpush1.xpose.msra.mxu0 0.0
        %917 = vmatprep.subr.mxu0 0.0
        %918 = vmatpush1.xpose.msra.mxu0 0.0
        %919 = vmatprep.subr.mxu0 0.0
        %920 = vmatpush1.xpose.msra.mxu0 0.0
        %921 = vmatprep.subr.mxu0 0.0
        %922 = vmatpush1.xpose.msra.mxu0 0.0
        %923 = vmatprep.subr.mxu0 0.0
        %924 = vmatpush1.xpose.msra.mxu0 0.0
        %925 = vmatprep.subr.mxu0 0.0
        %926 = vmatpush1.xpose.msra.mxu0 0.0
        %927 = vmatprep.subr.mxu0 0.0
        %928 = vmatpush1.xpose.msra.mxu0 0.0
        %929 = vmatprep.subr.mxu0 0.0
        %930 = vmatpush1.xpose.msra.mxu0 0.0
        %931 = vmatprep.subr.mxu0 0.0
        %932 = vmatpush1.xpose.msra.mxu0 0.0
        %933 = vmatprep.subr.mxu0 0.0
        %934 = vmatpush1.xpose.msra.mxu0 0.0
        %935 = vmatprep.subr.mxu0 0.0
        %936 = vmatpush1.xpose.msra.mxu0 0.0
        %937 = vmatprep.subr.mxu0 0.0
        %938 = vmatpush1.xpose.msra.mxu0 0.0
        %939 = vmatprep.subr.mxu0 0.0
        %940 = vmatpush1.xpose.msra.mxu0 0.0
        %941 = vmatprep.subr.mxu0 0.0
        %942 = vmatpush1.xpose.msra.mxu0 %v909
        %943 = vmatprep.subr.mxu0 0.0
        %944 = vmatpush2.xpose.msra.mxu0 0.0
        %945 = vmatprep.subr.mxu0 0.0
        %946 = vmatpush2.xpose.msra.mxu0 0.0
        %947 = vmatprep.subr.mxu0 0.0
        %948 = vmatpush2.xpose.msra.mxu0 0.0
        %949 = vmatprep.subr.mxu0 0.0
        %950 = vmatpush2.xpose.msra.mxu0 0.0
        %951 = vmatprep.subr.mxu0 0.0
        %952 = vmatpush2.xpose.msra.mxu0 0.0
        %953 = vmatprep.subr.mxu0 0.0
        %954 = vmatpush2.xpose.msra.mxu0 0.0
        %955 = vmatprep.subr.mxu0 0.0
        %956 = vmatpush2.xpose.msra.mxu0 0.0
        %957 = vmatprep.subr.mxu0 0.0
        %958 = vmatpush2.xpose.msra.mxu0 0.0
        %959 = vmatprep.subr.mxu0 0.0
        %960 = vmatpush2.xpose.msra.mxu0 0.0
        %961 = vmatprep.subr.mxu0 0.0
        %962 = vmatpush2.xpose.msra.mxu0 0.0
        %963 = vmatprep.subr.mxu0 0.0
        %964 = vmatpush2.xpose.msra.mxu0 0.0
        %965 = vmatprep.subr.mxu0 0.0
        %966 = vmatpush2.xpose.msra.mxu0 0.0
        %967 = vmatprep.subr.mxu0 0.0
        %968 = vmatpush2.xpose.msra.mxu0 0.0
        %969 = vmatprep.subr.mxu0 0.0
        %970 = vmatpush2.xpose.msra.mxu0 0.0
        %971 = vmatprep.subr.mxu0 0.0
        %972 = vmatpush2.xpose.msra.mxu0 0.0
        %973 = vmatprep.subr.mxu0 0.0
        %974 = vmatpush2.xpose.msra.mxu0 0.0
        %975 = vmatprep.mubr.f32.mxu0 0.0
        %976 = vmatmul.mubr.f32.gmra.mxu0 %v907
        %v977 = vpop.f32.mrf.mxu0
        %v978 = vadd.f32 0.0, %v977
        %v979 = vpop.f32.mrf.mxu0
        %980 = vdwg.mxu0
        %v981 = vmul.f32 %v978, 0.35355338
        %v982 = vsel %vm738, %v981, -inf
        %983 = vmax.xlane.f32.xlu0 %v982
        %v984 = vpop.xlane.xlu0 %983
        %v985 = vsub.f32 %v981, %v984
        %v986 = vmul.f32 %v985, 1.442695
        %v987 = vpow.pop %v986
        %v988 = vsel %vm738, %v987, 0.0
        %989 = vadd.xlane.f32.xlu0 %v988
        %v990 = vpop.xlane.xlu0 %989
        %v991 = vrcp.pop %v990
        %v992 = vmul.f32 %v990, %v991
        %v993 = vsub.f32 2.0, %v992
        %v994 = vmul.f32 %v991, %v993
        %v995 = vmul.f32 %v987, %v994
        %997 = vrot.lane.b32.xlu0 %v735, 120
        %v998 = vpop.permute.xlu0 %997
        %v1001 = vsel %vm738, %v995, 0
        %1003 = vmatprep.subr.mxu0 0.0
        %1004 = vmatpush1.msra.mxu0 0.0
        %1005 = vmatprep.subr.mxu0 0.0
        %1006 = vmatpush1.msra.mxu0 0.0
        %1007 = vmatprep.subr.mxu0 0.0
        %1008 = vmatpush1.msra.mxu0 0.0
        %1009 = vmatprep.subr.mxu0 0.0
        %1010 = vmatpush1.msra.mxu0 0.0
        %1011 = vmatprep.subr.mxu0 0.0
        %1012 = vmatpush1.msra.mxu0 0.0
        %1013 = vmatprep.subr.mxu0 0.0
        %1014 = vmatpush1.msra.mxu0 0.0
        %1015 = vmatprep.subr.mxu0 0.0
        %1016 = vmatpush1.msra.mxu0 0.0
        %1017 = vmatprep.subr.mxu0 0.0
        %1018 = vmatpush1.msra.mxu0 0.0
        %1019 = vmatprep.subr.mxu0 0.0
        %1020 = vmatpush1.msra.mxu0 0.0
        %1021 = vmatprep.subr.mxu0 0.0
        %1022 = vmatpush1.msra.mxu0 0.0
        %1023 = vmatprep.subr.mxu0 0.0
        %1024 = vmatpush1.msra.mxu0 0.0
        %1025 = vmatprep.subr.mxu0 0.0
        %1026 = vmatpush1.msra.mxu0 0.0
        %1027 = vmatprep.subr.mxu0 0.0
        %1028 = vmatpush1.msra.mxu0 0.0
        %1029 = vmatprep.subr.mxu0 0.0
        %1030 = vmatpush1.msra.mxu0 0.0
        %1031 = vmatprep.subr.mxu0 0.0
        %1032 = vmatpush1.msra.mxu0 0.0
        %1033 = vmatprep.subr.mxu0 0.0
        %1034 = vmatpush1.msra.mxu0 %v998
        %1035 = vmatprep.subr.mxu0 0.0
        %1036 = vmatpush2.msra.mxu0 0.0
        %1037 = vmatprep.subr.mxu0 0.0
        %1038 = vmatpush2.msra.mxu0 0.0
        %1039 = vmatprep.subr.mxu0 0.0
        %1040 = vmatpush2.msra.mxu0 0.0
        %1041 = vmatprep.subr.mxu0 0.0
        %1042 = vmatpush2.msra.mxu0 0.0
        %1043 = vmatprep.subr.mxu0 0.0
        %1044 = vmatpush2.msra.mxu0 0.0
        %1045 = vmatprep.subr.mxu0 0.0
        %1046 = vmatpush2.msra.mxu0 0.0
        %1047 = vmatprep.subr.mxu0 0.0
        %1048 = vmatpush2.msra.mxu0 0.0
        %1049 = vmatprep.subr.mxu0 0.0
        %1050 = vmatpush2.msra.mxu0 0.0
        %1051 = vmatprep.subr.mxu0 0.0
        %1052 = vmatpush2.msra.mxu0 0.0
        %1053 = vmatprep.subr.mxu0 0.0
        %1054 = vmatpush2.msra.mxu0 0.0
        %1055 = vmatprep.subr.mxu0 0.0
        %1056 = vmatpush2.msra.mxu0 0.0
        %1057 = vmatprep.subr.mxu0 0.0
        %1058 = vmatpush2.msra.mxu0 0.0
        %1059 = vmatprep.subr.mxu0 0.0
        %1060 = vmatpush2.msra.mxu0 0.0
        %1061 = vmatprep.subr.mxu0 0.0
        %1062 = vmatpush2.msra.mxu0 0.0
        %1063 = vmatprep.subr.mxu0 0.0
        %1064 = vmatpush2.msra.mxu0 0.0
        %1065 = vmatprep.subr.mxu0 0.0
        %1066 = vmatpush2.msra.mxu0 0.0
        %1067 = vmatprep.mubr.f32.mxu0 0.0
        %1068 = vmatmul.mubr.f32.gmra.mxu0 %v1001
        %v1069 = vpop.f32.mrf.mxu0
        %v1070 = vadd.f32 0.0, %v1069
        %v1071 = vpop.f32.mrf.mxu0
        %1072 = vdwg.mxu0
        %1073 = vrot.lane.b32.xlu0 %v573, 112
        %v1074 = vpop.permute.xlu0 %1073
        %1075 = vrot.lane.b32.xlu0 %v654, 112
        %v1076 = vpop.permute.xlu0 %1075
        %v1077 = vsel %vm738, %v1074, 0
        %v1079 = vsel %vm738, %v1076, 0
        %1081 = vmatprep.subr.mxu0 0.0
        %1082 = vmatpush1.xpose.msra.mxu0 0.0
        %1083 = vmatprep.subr.mxu0 0.0
        %1084 = vmatpush1.xpose.msra.mxu0 0.0
        %1085 = vmatprep.subr.mxu0 0.0
        %1086 = vmatpush1.xpose.msra.mxu0 0.0
        %1087 = vmatprep.subr.mxu0 0.0
        %1088 = vmatpush1.xpose.msra.mxu0 0.0
        %1089 = vmatprep.subr.mxu0 0.0
        %1090 = vmatpush1.xpose.msra.mxu0 0.0
        %1091 = vmatprep.subr.mxu0 0.0
        %1092 = vmatpush1.xpose.msra.mxu0 0.0
        %1093 = vmatprep.subr.mxu0 0.0
        %1094 = vmatpush1.xpose.msra.mxu0 0.0
        %1095 = vmatprep.subr.mxu0 0.0
        %1096 = vmatpush1.xpose.msra.mxu0 0.0
        %1097 = vmatprep.subr.mxu0 0.0
        %1098 = vmatpush1.xpose.msra.mxu0 0.0
        %1099 = vmatprep.subr.mxu0 0.0
        %1100 = vmatpush1.xpose.msra.mxu0 0.0
        %1101 = vmatprep.subr.mxu0 0.0
        %1102 = vmatpush1.xpose.msra.mxu0 0.0
        %1103 = vmatprep.subr.mxu0 0.0
        %1104 = vmatpush1.xpose.msra.mxu0 0.0
        %1105 = vmatprep.subr.mxu0 0.0
        %1106 = vmatpush1.xpose.msra.mxu0 0.0
        %1107 = vmatprep.subr.mxu0 0.0
        %1108 = vmatpush1.xpose.msra.mxu0 0.0
        %1109 = vmatprep.subr.mxu0 0.0
        %1110 = vmatpush1.xpose.msra.mxu0 0.0
        %1111 = vmatprep.subr.mxu0 0.0
        %1112 = vmatpush1.xpose.msra.mxu0 %v1079
        %1113 = vmatprep.subr.mxu0 0.0
        %1114 = vmatpush2.xpose.msra.mxu0 0.0
        %1115 = vmatprep.subr.mxu0 0.0
        %1116 = vmatpush2.xpose.msra.mxu0 0.0
        %1117 = vmatprep.subr.mxu0 0.0
        %1118 = vmatpush2.xpose.msra.mxu0 0.0
        %1119 = vmatprep.subr.mxu0 0.0
        %1120 = vmatpush2.xpose.msra.mxu0 0.0
        %1121 = vmatprep.subr.mxu0 0.0
        %1122 = vmatpush2.xpose.msra.mxu0 0.0
        %1123 = vmatprep.subr.mxu0 0.0
        %1124 = vmatpush2.xpose.msra.mxu0 0.0
        %1125 = vmatprep.subr.mxu0 0.0
        %1126 = vmatpush2.xpose.msra.mxu0 0.0
        %1127 = vmatprep.subr.mxu0 0.0
        %1128 = vmatpush2.xpose.msra.mxu0 0.0
        %1129 = vmatprep.subr.mxu0 0.0
        %1130 = vmatpush2.xpose.msra.mxu0 0.0
        %1131 = vmatprep.subr.mxu0 0.0
        %1132 = vmatpush2.xpose.msra.mxu0 0.0
        %1133 = vmatprep.subr.mxu0 0.0
        %1134 = vmatpush2.xpose.msra.mxu0 0.0
        %1135 = vmatprep.subr.mxu0 0.0
        %1136 = vmatpush2.xpose.msra.mxu0 0.0
        %1137 = vmatprep.subr.mxu0 0.0
        %1138 = vmatpush2.xpose.msra.mxu0 0.0
        %1139 = vmatprep.subr.mxu0 0.0
        %1140 = vmatpush2.xpose.msra.mxu0 0.0
        %1141 = vmatprep.subr.mxu0 0.0
        %1142 = vmatpush2.xpose.msra.mxu0 0.0
        %1143 = vmatprep.subr.mxu0 0.0
        %1144 = vmatpush2.xpose.msra.mxu0 0.0
        %1145 = vmatprep.mubr.f32.mxu0 0.0
        %1146 = vmatmul.mubr.f32.gmra.mxu0 %v1077
        %v1147 = vpop.f32.mrf.mxu0
        %v1148 = vadd.f32 0.0, %v1147
        %v1149 = vpop.f32.mrf.mxu0
        %1150 = vdwg.mxu0
        %v1151 = vmul.f32 %v1148, 0.35355338
        %v1152 = vsel %vm738, %v1151, -inf
        %1153 = vmax.xlane.f32.xlu0 %v1152
        %v1154 = vpop.xlane.xlu0 %1153
        %v1155 = vsub.f32 %v1151, %v1154
        %v1156 = vmul.f32 %v1155, 1.442695
        %v1157 = vpow.pop %v1156
        %v1158 = vsel %vm738, %v1157, 0.0
        %1159 = vadd.xlane.f32.xlu0 %v1158
        %v1160 = vpop.xlane.xlu0 %1159
        %v1161 = vrcp.pop %v1160
        %v1162 = vmul.f32 %v1160, %v1161
        %v1163 = vsub.f32 2.0, %v1162
        %v1164 = vmul.f32 %v1161, %v1163
        %v1165 = vmul.f32 %v1157, %v1164
        %1166 = vrot.lane.b32.xlu0 %v735, 112
        %v1167 = vpop.permute.xlu0 %1166
        %v1170 = vsel %vm738, %v1165, 0
        %1172 = vmatprep.subr.mxu0 0.0
        %1173 = vmatpush1.msra.mxu0 0.0
        %1174 = vmatprep.subr.mxu0 0.0
        %1175 = vmatpush1.msra.mxu0 0.0
        %1176 = vmatprep.subr.mxu0 0.0
        %1177 = vmatpush1.msra.mxu0 0.0
        %1178 = vmatprep.subr.mxu0 0.0
        %1179 = vmatpush1.msra.mxu0 0.0
        %1180 = vmatprep.subr.mxu0 0.0
        %1181 = vmatpush1.msra.mxu0 0.0
        %1182 = vmatprep.subr.mxu0 0.0
        %1183 = vmatpush1.msra.mxu0 0.0
        %1184 = vmatprep.subr.mxu0 0.0
        %1185 = vmatpush1.msra.mxu0 0.0
        %1186 = vmatprep.subr.mxu0 0.0
        %1187 = vmatpush1.msra.mxu0 0.0
        %1188 = vmatprep.subr.mxu0 0.0
        %1189 = vmatpush1.msra.mxu0 0.0
        %1190 = vmatprep.subr.mxu0 0.0
        %1191 = vmatpush1.msra.mxu0 0.0
        %1192 = vmatprep.subr.mxu0 0.0
        %1193 = vmatpush1.msra.mxu0 0.0
        %1194 = vmatprep.subr.mxu0 0.0
        %1195 = vmatpush1.msra.mxu0 0.0
        %1196 = vmatprep.subr.mxu0 0.0
        %1197 = vmatpush1.msra.mxu0 0.0
        %1198 = vmatprep.subr.mxu0 0.0
        %1199 = vmatpush1.msra.mxu0 0.0
        %1200 = vmatprep.subr.mxu0 0.0
        %1201 = vmatpush1.msra.mxu0 0.0
        %1202 = vmatprep.subr.mxu0 0.0
        %1203 = vmatpush1.msra.mxu0 %v1167
        %1204 = vmatprep.subr.mxu0 0.0
        %1205 = vmatpush2.msra.mxu0 0.0
        %1206 = vmatprep.subr.mxu0 0.0
        %1207 = vmatpush2.msra.mxu0 0.0
        %1208 = vmatprep.subr.mxu0 0.0
        %1209 = vmatpush2.msra.mxu0 0.0
        %1210 = vmatprep.subr.mxu0 0.0
        %1211 = vmatpush2.msra.mxu0 0.0
        %1212 = vmatprep.subr.mxu0 0.0
        %1213 = vmatpush2.msra.mxu0 0.0
        %1214 = vmatprep.subr.mxu0 0.0
        %1215 = vmatpush2.msra.mxu0 0.0
        %1216 = vmatprep.subr.mxu0 0.0
        %1217 = vmatpush2.msra.mxu0 0.0
        %1218 = vmatprep.subr.mxu0 0.0
        %1219 = vmatpush2.msra.mxu0 0.0
        %1220 = vmatprep.subr.mxu0 0.0
        %1221 = vmatpush2.msra.mxu0 0.0
        %1222 = vmatprep.subr.mxu0 0.0
        %1223 = vmatpush2.msra.mxu0 0.0
        %1224 = vmatprep.subr.mxu0 0.0
        %1225 = vmatpush2.msra.mxu0 0.0
        %1226 = vmatprep.subr.mxu0 0.0
        %1227 = vmatpush2.msra.mxu0 0.0
        %1228 = vmatprep.subr.mxu0 0.0
        %1229 = vmatpush2.msra.mxu0 0.0
        %1230 = vmatprep.subr.mxu0 0.0
        %1231 = vmatpush2.msra.mxu0 0.0
        %1232 = vmatprep.subr.mxu0 0.0
        %1233 = vmatpush2.msra.mxu0 0.0
        %1234 = vmatprep.subr.mxu0 0.0
        %1235 = vmatpush2.msra.mxu0 0.0
        %1236 = vmatprep.mubr.f32.mxu0 0.0
        %1237 = vmatmul.mubr.f32.gmra.mxu0 %v1170
        %v1238 = vpop.f32.mrf.mxu0
        %v1239 = vadd.f32 0.0, %v1238
        %v1240 = vpop.f32.mrf.mxu0
        %1241 = vdwg.mxu0
        %1242 = vrot.lane.b32.xlu0 %v573, 104
        %v1243 = vpop.permute.xlu0 %1242
        %1244 = vrot.lane.b32.xlu0 %v654, 104
        %v1245 = vpop.permute.xlu0 %1244
        %v1246 = vsel %vm738, %v1243, 0
        %v1248 = vsel %vm738, %v1245, 0
        %1250 = vmatprep.subr.mxu0 0.0
        %1251 = vmatpush1.xpose.msra.mxu0 0.0
        %1252 = vmatprep.subr.mxu0 0.0
        %1253 = vmatpush1.xpose.msra.mxu0 0.0
        %1254 = vmatprep.subr.mxu0 0.0
        %1255 = vmatpush1.xpose.msra.mxu0 0.0
        %1256 = vmatprep.subr.mxu0 0.0
        %1257 = vmatpush1.xpose.msra.mxu0 0.0
        %1258 = vmatprep.subr.mxu0 0.0
        %1259 = vmatpush1.xpose.msra.mxu0 0.0
        %1260 = vmatprep.subr.mxu0 0.0
        %1261 = vmatpush1.xpose.msra.mxu0 0.0
        %1262 = vmatprep.subr.mxu0 0.0
        %1263 = vmatpush1.xpose.msra.mxu0 0.0
        %1264 = vmatprep.subr.mxu0 0.0
        %1265 = vmatpush1.xpose.msra.mxu0 0.0
        %1266 = vmatprep.subr.mxu0 0.0
        %1267 = vmatpush1.xpose.msra.mxu0 0.0
        %1268 = vmatprep.subr.mxu0 0.0
        %1269 = vmatpush1.xpose.msra.mxu0 0.0
        %1270 = vmatprep.subr.mxu0 0.0
        %1271 = vmatpush1.xpose.msra.mxu0 0.0
        %1272 = vmatprep.subr.mxu0 0.0
        %1273 = vmatpush1.xpose.msra.mxu0 0.0
        %1274 = vmatprep.subr.mxu0 0.0
        %1275 = vmatpush1.xpose.msra.mxu0 0.0
        %1276 = vmatprep.subr.mxu0 0.0
        %1277 = vmatpush1.xpose.msra.mxu0 0.0
        %1278 = vmatprep.subr.mxu0 0.0
        %1279 = vmatpush1.xpose.msra.mxu0 0.0
        %1280 = vmatprep.subr.mxu0 0.0
        %1281 = vmatpush1.xpose.msra.mxu0 %v1248
        %1282 = vmatprep.subr.mxu0 0.0
        %1283 = vmatpush2.xpose.msra.mxu0 0.0
        %1284 = vmatprep.subr.mxu0 0.0
        %1285 = vmatpush2.xpose.msra.mxu0 0.0
        %1286 = vmatprep.subr.mxu0 0.0
        %1287 = vmatpush2.xpose.msra.mxu0 0.0
        %1288 = vmatprep.subr.mxu0 0.0
        %1289 = vmatpush2.xpose.msra.mxu0 0.0
        %1290 = vmatprep.subr.mxu0 0.0
        %1291 = vmatpush2.xpose.msra.mxu0 0.0
        %1292 = vmatprep.subr.mxu0 0.0
        %1293 = vmatpush2.xpose.msra.mxu0 0.0
        %1294 = vmatprep.subr.mxu0 0.0
        %1295 = vmatpush2.xpose.msra.mxu0 0.0
        %1296 = vmatprep.subr.mxu0 0.0
        %1297 = vmatpush2.xpose.msra.mxu0 0.0
        %1298 = vmatprep.subr.mxu0 0.0
        %1299 = vmatpush2.xpose.msra.mxu0 0.0
        %1300 = vmatprep.subr.mxu0 0.0
        %1301 = vmatpush2.xpose.msra.mxu0 0.0
        %1302 = vmatprep.subr.mxu0 0.0
        %1303 = vmatpush2.xpose.msra.mxu0 0.0
        %1304 = vmatprep.subr.mxu0 0.0
        %1305 = vmatpush2.xpose.msra.mxu0 0.0
        %1306 = vmatprep.subr.mxu0 0.0
        %1307 = vmatpush2.xpose.msra.mxu0 0.0
        %1308 = vmatprep.subr.mxu0 0.0
        %1309 = vmatpush2.xpose.msra.mxu0 0.0
        %1310 = vmatprep.subr.mxu0 0.0
        %1311 = vmatpush2.xpose.msra.mxu0 0.0
        %1312 = vmatprep.subr.mxu0 0.0
        %1313 = vmatpush2.xpose.msra.mxu0 0.0
        %1314 = vmatprep.mubr.f32.mxu0 0.0
        %1315 = vmatmul.mubr.f32.gmra.mxu0 %v1246
        %v1316 = vpop.f32.mrf.mxu0
        %v1317 = vadd.f32 0.0, %v1316
        %v1318 = vpop.f32.mrf.mxu0
        %1319 = vdwg.mxu0
        %v1320 = vmul.f32 %v1317, 0.35355338
        %v1321 = vsel %vm738, %v1320, -inf
        %1322 = vmax.xlane.f32.xlu0 %v1321
        %v1323 = vpop.xlane.xlu0 %1322
        %v1324 = vsub.f32 %v1320, %v1323
        %v1325 = vmul.f32 %v1324, 1.442695
        %v1326 = vpow.pop %v1325
        %v1327 = vsel %vm738, %v1326, 0.0
        %1328 = vadd.xlane.f32.xlu0 %v1327
        %v1329 = vpop.xlane.xlu0 %1328
        %v1330 = vrcp.pop %v1329
        %v1331 = vmul.f32 %v1329, %v1330
        %v1332 = vsub.f32 2.0, %v1331
        %v1333 = vmul.f32 %v1330, %v1332
        %v1334 = vmul.f32 %v1326, %v1333
        %1335 = vrot.lane.b32.xlu0 %v735, 104
        %v1336 = vpop.permute.xlu0 %1335
        %v1339 = vsel %vm738, %v1334, 0
        %1341 = vmatprep.subr.mxu0 0.0
        %1342 = vmatpush1.msra.mxu0 0.0
        %1343 = vmatprep.subr.mxu0 0.0
        %1344 = vmatpush1.msra.mxu0 0.0
        %1345 = vmatprep.subr.mxu0 0.0
        %1346 = vmatpush1.msra.mxu0 0.0
        %1347 = vmatprep.subr.mxu0 0.0
        %1348 = vmatpush1.msra.mxu0 0.0
        %1349 = vmatprep.subr.mxu0 0.0
        %1350 = vmatpush1.msra.mxu0 0.0
        %1351 = vmatprep.subr.mxu0 0.0
        %1352 = vmatpush1.msra.mxu0 0.0
        %1353 = vmatprep.subr.mxu0 0.0
        %1354 = vmatpush1.msra.mxu0 0.0
        %1355 = vmatprep.subr.mxu0 0.0
        %1356 = vmatpush1.msra.mxu0 0.0
        %1357 = vmatprep.subr.mxu0 0.0
        %1358 = vmatpush1.msra.mxu0 0.0
        %1359 = vmatprep.subr.mxu0 0.0
        %1360 = vmatpush1.msra.mxu0 0.0
        %1361 = vmatprep.subr.mxu0 0.0
        %1362 = vmatpush1.msra.mxu0 0.0
        %1363 = vmatprep.subr.mxu0 0.0
        %1364 = vmatpush1.msra.mxu0 0.0
        %1365 = vmatprep.subr.mxu0 0.0
        %1366 = vmatpush1.msra.mxu0 0.0
        %1367 = vmatprep.subr.mxu0 0.0
        %1368 = vmatpush1.msra.mxu0 0.0
        %1369 = vmatprep.subr.mxu0 0.0
        %1370 = vmatpush1.msra.mxu0 0.0
        %1371 = vmatprep.subr.mxu0 0.0
        %1372 = vmatpush1.msra.mxu0 %v1336
        %1373 = vmatprep.subr.mxu0 0.0
        %1374 = vmatpush2.msra.mxu0 0.0
        %1375 = vmatprep.subr.mxu0 0.0
        %1376 = vmatpush2.msra.mxu0 0.0
        %1377 = vmatprep.subr.mxu0 0.0
        %1378 = vmatpush2.msra.mxu0 0.0
        %1379 = vmatprep.subr.mxu0 0.0
        %1380 = vmatpush2.msra.mxu0 0.0
        %1381 = vmatprep.subr.mxu0 0.0
        %1382 = vmatpush2.msra.mxu0 0.0
        %1383 = vmatprep.subr.mxu0 0.0
        %1384 = vmatpush2.msra.mxu0 0.0
        %1385 = vmatprep.subr.mxu0 0.0
        %1386 = vmatpush2.msra.mxu0 0.0
        %1387 = vmatprep.subr.mxu0 0.0
        %1388 = vmatpush2.msra.mxu0 0.0
        %1389 = vmatprep.subr.mxu0 0.0
        %1390 = vmatpush2.msra.mxu0 0.0
        %1391 = vmatprep.subr.mxu0 0.0
        %1392 = vmatpush2.msra.mxu0 0.0
        %1393 = vmatprep.subr.mxu0 0.0
        %1394 = vmatpush2.msra.mxu0 0.0
        %1395 = vmatprep.subr.mxu0 0.0
        %1396 = vmatpush2.msra.mxu0 0.0
        %1397 = vmatprep.subr.mxu0 0.0
        %1398 = vmatpush2.msra.mxu0 0.0
        %1399 = vmatprep.subr.mxu0 0.0
        %1400 = vmatpush2.msra.mxu0 0.0
        %1401 = vmatprep.subr.mxu0 0.0
        %1402 = vmatpush2.msra.mxu0 0.0
        %1403 = vmatprep.subr.mxu0 0.0
        %1404 = vmatpush2.msra.mxu0 0.0
        %1405 = vmatprep.mubr.f32.mxu0 0.0
        %1406 = vmatmul.mubr.f32.gmra.mxu0 %v1339
        %v1407 = vpop.f32.mrf.mxu0
        %v1408 = vadd.f32 0.0, %v1407
        %v1409 = vpop.f32.mrf.mxu0
        %1410 = vdwg.mxu0
        %1412 = vrot.lane.b32.xlu0 %v1070, 8
        %v1413 = vpop.permute.xlu0 %1412
        %1416 = vrot.lane.b32.xlu0 %v1239, 16
        %v1417 = vpop.permute.xlu0 %1416
        %1420 = vrot.lane.b32.xlu0 %v1408, 24
        %v1421 = vpop.permute.xlu0 %1420
        %v1423 = vsel %vm738, %v900, %v1413
        %vm1424 = vcmask 130048
        %v1425 = vsel %vm1424, %v1423, %v1417
        %vm1426 = vcmask 195584
        %v1427 = vsel %vm1426, %v1425, %v1421
        %v1428 = vld [vmem:[#allocation10] sm:$0xff]
        %v1429 = vld [vmem:[#allocation10 + $0x8] sm:$0xff]
        %v1430 = vld [vmem:[#allocation10 + $0x10] sm:$0xff]
        %v1431 = vld [vmem:[#allocation10 + $0x18] sm:$0xff]
        %v1432 = vld [vmem:[%s10] sm:$0x1]
        %v1434 = vlaneseq
        %v1435 = vshrl.u32 %v1434, 7
        %v1436 = vsub.s32 0, %v1435
        %v1437 = vrot.slane %v1432, %v1436
        %v1440 = vsel %vm463, %v1427, 0
        %1442 = vmatprep.subr.mxu0 0.0
        %1443 = vmatpush1.msra.mxu0 0.0
        %1444 = vmatprep.subr.mxu0 0.0
        %1445 = vmatpush1.msra.mxu0 0.0
        %1446 = vmatprep.subr.mxu0 0.0
        %1447 = vmatpush1.msra.mxu0 0.0
        %1448 = vmatprep.subr.mxu0 0.0
        %1449 = vmatpush1.msra.mxu0 0.0
        %1450 = vmatprep.subr.mxu0 0.0
        %1451 = vmatpush1.msra.mxu0 0.0
        %1452 = vmatprep.subr.mxu0 0.0
        %1453 = vmatpush1.msra.mxu0 0.0
        %1454 = vmatprep.subr.mxu0 0.0
        %1455 = vmatpush1.msra.mxu0 0.0
        %1456 = vmatprep.subr.mxu0 0.0
        %1457 = vmatpush1.msra.mxu0 0.0
        %1458 = vmatprep.subr.mxu0 0.0
        %1459 = vmatpush1.msra.mxu0 0.0
        %1460 = vmatprep.subr.mxu0 0.0
        %1461 = vmatpush1.msra.mxu0 0.0
        %1462 = vmatprep.subr.mxu0 0.0
        %1463 = vmatpush1.msra.mxu0 0.0
        %1464 = vmatprep.subr.mxu0 0.0
        %1465 = vmatpush1.msra.mxu0 0.0
        %1466 = vmatprep.subr.mxu0 0.0
        %1467 = vmatpush1.msra.mxu0 %v1431
        %1468 = vmatprep.subr.mxu0 0.0
        %1469 = vmatpush1.msra.mxu0 %v1430
        %1470 = vmatprep.subr.mxu0 0.0
        %1471 = vmatpush1.msra.mxu0 %v1429
        %1472 = vmatprep.subr.mxu0 0.0
        %1473 = vmatpush1.msra.mxu0 %v1428
        %1474 = vmatprep.subr.mxu0 0.0
        %1475 = vmatpush2.msra.mxu0 0.0
        %1476 = vmatprep.subr.mxu0 0.0
        %1477 = vmatpush2.msra.mxu0 0.0
        %1478 = vmatprep.subr.mxu0 0.0
        %1479 = vmatpush2.msra.mxu0 0.0
        %1480 = vmatprep.subr.mxu0 0.0
        %1481 = vmatpush2.msra.mxu0 0.0
        %1482 = vmatprep.subr.mxu0 0.0
        %1483 = vmatpush2.msra.mxu0 0.0
        %1484 = vmatprep.subr.mxu0 0.0
        %1485 = vmatpush2.msra.mxu0 0.0
        %1486 = vmatprep.subr.mxu0 0.0
        %1487 = vmatpush2.msra.mxu0 0.0
        %1488 = vmatprep.subr.mxu0 0.0
        %1489 = vmatpush2.msra.mxu0 0.0
        %1490 = vmatprep.subr.mxu0 0.0
        %1491 = vmatpush2.msra.mxu0 0.0
        %1492 = vmatprep.subr.mxu0 0.0
        %1493 = vmatpush2.msra.mxu0 0.0
        %1494 = vmatprep.subr.mxu0 0.0
        %1495 = vmatpush2.msra.mxu0 0.0
        %1496 = vmatprep.subr.mxu0 0.0
        %1497 = vmatpush2.msra.mxu0 0.0
        %1498 = vmatprep.subr.mxu0 0.0
        %1499 = vmatpush2.msra.mxu0 0.0
        %1500 = vmatprep.subr.mxu0 0.0
        %1501 = vmatpush2.msra.mxu0 0.0
        %1502 = vmatprep.subr.mxu0 0.0
        %1503 = vmatpush2.msra.mxu0 0.0
        %1504 = vmatprep.subr.mxu0 0.0
        %1505 = vmatpush2.msra.mxu0 0.0
        %1506 = vmatprep.mubr.f32.mxu0 0.0
        %1507 = vmatmul.mubr.f32.gmra.mxu0 %v1440
        %v1508 = vpop.f32.mrf.mxu0
        %v1509 = vadd.f32 %v1437, %v1508
        %v1510 = vpop.f32.mrf.mxu0
        %1511 = vdwg.mxu0
        %v1512 = vadd.f32 %v460, %v1509
        %1513 = vst.msk [vmem:[%s459] sm:$0xff] %vm463, %v1512
        %s1514 = sand.u32 %s274, 1
        %s1515 = scalar_lea.sflag [#allocation4], %s1514
        %s1516 = sand.u32 %s274, 1
        %s1517 = smul.addr %s1516, 8
        %s1518 = scalar_lea.vmem [#allocation11], %s1517
        // Predicated region
        $region85: #{tpu_custom_call.1} parent=63 // pred_check
          %p1519 = pneg %p284
        $region86: #{tpu_custom_call.1} parent=63 // pred_check_branch
          %1521 = sbr.rel (%p1519) target = $region88
        $region87: #{tpu_custom_call.1} parent=63 // pred_region
          %s1523 = ssub.s32 128, 128
          %1524 = vsyncadd %s1515, %s1523
          %s1525 = smul.addr %s30, 128
          %s1526 = scalar_lea.hbm %s11, %s1525
          %s1528 = sshll.u32 %s1518, 4
          %s1529 = int_to_ptr.vmem [resolvable:$true] %s1528
          %1531 = dma.vmem_to_hbm [thread:$0]  %s1529, 128, %s1526, %s1515
        $region88: #{tpu_custom_call.1} parent=63 // pred_fallthru
          _
      $region64: #{tpu_custom_call.1} parent=5 // pred_fallthru
        _
      %p1532 = scmp.le.s32.totalorder 2, %s25
      // Predicated region
      $region89: #{tpu_custom_call.1} parent=5 // pred_check
        %p1533 = pneg %p1532
      $region90: #{tpu_custom_call.1} parent=5 // pred_check_branch
        %1535 = sbr.rel (%p1533) target = $region92
      $region91: #{tpu_custom_call.1} parent=5 // pred_region
        %s1536 = ssub.s32 %s25, 2
        // Predicated region
        $region93: #{tpu_custom_call.1} parent=91 // pred_check
          %p1537 = pneg %p290
        $region94: #{tpu_custom_call.1} parent=91 // pred_check_branch
          %1539 = sbr.rel (%p1537) target = $region96
        $region95: #{tpu_custom_call.1} parent=91 // pred_region
          %s1540 = sand.u32 %s275, 1
          %s1541 = scalar_lea.sflag [#allocation4], %s1540
          %s1542 = sand.u32 %s275, 1
          %s1543 = smul.addr %s1542, 8
          %s1544 = scalar_lea.vmem [#allocation11], %s1543
          %1545 = dma.done %s1541, 128
        $region96: #{tpu_custom_call.1} parent=91 // pred_fallthru
          _
      $region92: #{tpu_custom_call.1} parent=5 // pred_fallthru
        _
    $region6: #{tpu_custom_call.1} parent=1 // loop_footer
      %s29 = sadd.s32 1, %s25
    $region7: #{tpu_custom_call.1} parent=1 // loop_footer_branch
      %24 = sbr.rel target = $region3
    $region8: #{tpu_custom_call.1} parent=1 // loop_exit
      _
    %1546 = vsyncpa [#allocation3], 1
    %s1547 = scalar_lea.sflag [#allocation3], 1
    %1548 = vsyncpa %s1547, 1
    %1549 = vsyncpa [#allocation6], 1
    %1550 = vsyncpa [#allocation9], 1
    %1551 = vsyncpa [#allocation4], 1
    %s1552 = scalar_lea.sflag [#allocation4], 1
    %1553 = vsyncpa %s1552, 1

</llo_original>
